<compile_context>
chip_gen: v7x
topology: tpu7x:2x2x1
jax: 0.10.0
libtpu: 0.0.40
codegen_flags: <defaults>
</compile_context>

<pallas_src>
import functools
import math

import jax
import jax.numpy as jnp
from jax.experimental import pallas as pl
from jax.experimental.pallas import tpu as pltpu


def _rup(x, m):
    return ((x + m - 1) // m) * m


# ----------------------------------------------------------------------------
# Pallas GEMM kernel with fused bias/BN/ReLU epilogue
#   a: (tm, tk) bf16 im2col patches
#   b: (tk, tn) bf16 flattened conv weights
#   ss: (2, tn) f32 -> row 0 = per-channel scale, row 1 = per-channel shift
#   o: (tm, tn)  out_dtype = relu(acc * scale + shift)
# ----------------------------------------------------------------------------
def _conv_gemm_kernel(a_ref, b_ref, ss_ref, o_ref, acc_ref):
    @pl.when(pl.program_id(2) == 0)
    def _():
        acc_ref[...] = jnp.zeros_like(acc_ref)

    acc_ref[...] += jnp.dot(a_ref[...], b_ref[...],
                            preferred_element_type=jnp.float32)

    @pl.when(pl.program_id(2) == pl.num_programs(2) - 1)
    def _():
        scale = ss_ref[0:1, :]                    # (1, tn) f32
        shift = ss_ref[1:2, :]                    # (1, tn) f32
        y = acc_ref[...] * scale + shift          # fused bias + BN affine
        o_ref[...] = jnp.maximum(y, 0.0).astype(o_ref.dtype)   # fused ReLU


def _pick_tiles(M, K, N):
    """Tile selection: lane dims multiples of 128, sublane multiples of 8."""
    Np = _rup(N, 128)
    tn = 256 if (Np % 256 == 0 and Np >= 256) else 128   # fill 256x256 MXU when possible
    Kp = _rup(K, 128)
    if Kp <= 2048:
        tk = Kp                                          # single K step, no tiny-K loop
    elif Kp % 512 == 0:
        tk = 512
    elif Kp % 256 == 0:
        tk = 256
    else:
        tk = 128
    tm = min(256, _rup(M, 8))
    Mp = _rup(M, tm)
    # keep the parallel (i, j) grid >= 2 tiles so both v7x TensorCores get work
    if (Mp // tm) * (Np // tn) < 2 and tm > 8:
        tm = max(8, (tm // 2) // 8 * 8)
        Mp = _rup(M, tm)
    return tm, tk, tn, Mp, Kp, Np


def conv3x3_bn_relu_nhwc(x, w, b, bn, out_dtype=jnp.float32):
    """Fused Conv2d(3x3, pad=1, stride=1) + BN(inference) + ReLU.

    x: (N, H, W, Cin) NHWC (f32 or bf16), w: (Cout, Cin, 3, 3) PyTorch OIHW.
    Returns (N, H, W, Cout) NHWC in out_dtype.
    """
    n, h, wd, cin = x.shape
    cout = w.shape[0]

    # NHWC im2col patches, channel innermost -> (N*H*W, 9*Cin)
    xp = jnp.pad(x, ((0, 0), (1, 1), (1, 1), (0, 0)))
    cols = [xp[:, dy:dy + h, dx:dx + wd, :] for dy in range(3) for dx in range(3)]
    patches = jnp.concatenate(cols, axis=-1).reshape(n * h * wd, 9 * cin)
    # (Cout, Cin, kh, kw) -> (kh, kw, Cin, Cout) -> (9*Cin, Cout): matches patch order
    wmat = jnp.transpose(w, (2, 3, 1, 0)).reshape(9 * cin, cout)

    # Fold bias + BatchNorm into per-output-channel scale/shift (f32 epilogue).
    scale = bn['gamma'] / jnp.sqrt(bn['var'] + 1e-5)
    shift = (b - bn['mean']) * scale + bn['beta']
    ss = jnp.stack([scale, shift]).astype(jnp.float32)       # (2, Cout)

    M, K, N = n * h * wd, 9 * cin, cout
    tm, tk, tn, Mp, Kp, Np = _pick_tiles(M, K, N)

    a_p = jnp.pad(patches, ((0, Mp - M), (0, Kp - K))).astype(jnp.bfloat16)
    b_p = jnp.pad(wmat, ((0, Kp - K), (0, Np - N))).astype(jnp.bfloat16)
    ss_p = jnp.pad(ss, ((0, 0), (0, Np - N)))

    out = pl.pallas_call(
        _conv_gemm_kernel,
        out_shape=jax.ShapeDtypeStruct((Mp, Np), out_dtype),
        grid=(Mp // tm, Np // tn, Kp // tk),
        in_specs=[pl.BlockSpec((tm, tk), lambda i, j, k: (i, k)),
                  pl.BlockSpec((tk, tn), lambda i, j, k: (k, j)),
                  pl.BlockSpec((2, tn), lambda i, j, k: (0, j))],
        out_specs=pl.BlockSpec((tm, tn), lambda i, j, k: (i, j)),
        scratch_shapes=[pltpu.VMEM((tm, tn), jnp.float32)],
        compiler_params=pltpu.CompilerParams(
            dimension_semantics=("parallel", "parallel", "arbitrary")),
    )(a_p, b_p, ss_p)
    return out[:M, :N].reshape(n, h, wd, cout)


def double_conv(params, x):
    """DoubleConv forward.  x: (N, Cin, H, W) f32 NCHW -> (N, Cout, H, W) f32."""
    xn = jnp.transpose(x, (0, 2, 3, 1))                      # NHWC once at entry
    y = conv3x3_bn_relu_nhwc(xn, params['c1']['w'], params['c1']['b'],
                             params['bn1'], out_dtype=jnp.bfloat16)
    z = conv3x3_bn_relu_nhwc(y, params['c2']['w'], params['c2']['b'],
                             params['bn2'], out_dtype=jnp.float32)
    return jnp.transpose(z, (0, 3, 1, 2))                    # back to NCHW at exit


# ----------------------------------------------------------------------------
# Deterministic parameter init (PyTorch-default-style conv bounds; BN running
# stats randomized so the fused inference-mode BN path is exercised).
# ----------------------------------------------------------------------------
def _init_conv(key, cin, cout, k=3):
    k1, k2 = jax.random.split(key)
    bound = 1.0 / math.sqrt(cin * k * k)
    return {'w': jax.random.uniform(k1, (cout, cin, k, k), jnp.float32, -bound, bound),
            'b': jax.random.uniform(k2, (cout,), jnp.float32, -bound, bound)}


def _init_bn(key, c):
    k1, k2, k3, k4 = jax.random.split(key, 4)
    return {'gamma': jax.random.uniform(k1, (c,), jnp.float32, 0.5, 1.5),
            'beta': jax.random.uniform(k2, (c,), jnp.float32, -0.5, 0.5),
            'mean': jax.random.uniform(k3, (c,), jnp.float32, -0.2, 0.2),
            'var': jax.random.uniform(k4, (c,), jnp.float32, 0.5, 1.5)}


def init_double_conv(key, cin, cout, cmid=None):
    cmid = cmid if cmid is not None else cout
    ks = jax.random.split(key, 4)
    return {'c1': _init_conv(ks[0], cin, cmid), 'bn1': _init_bn(ks[1], cmid),
            'c2': _init_conv(ks[2], cmid, cout), 'bn2': _init_bn(ks[3], cout)}


# ----------------------------------------------------------------------------
# Pure-JAX reference (f32) for a correctness check
# ----------------------------------------------------------------------------
def _ref_double_conv(params, x):
    def conv_bn_relu(x, w, b, bn):
        y = jax.lax.conv_general_dilated(
            x, w, window_strides=(1, 1), padding=((1, 1), (1, 1)),
            dimension_numbers=('NCHW', 'OIHW', 'NCHW'))
        y = y + b[None, :, None, None]
        s = (bn['gamma'] / jnp.sqrt(bn['var'] + 1e-5))[None, :, None, None]
        y = (y - bn['mean'][None, :, None, None]) * s + bn['beta'][None, :, None, None]
        return jnp.maximum(y, 0.0)

    y = conv_bn_relu(x, params['c1']['w'], params['c1']['b'], params['bn1'])
    return conv_bn_relu(y, params['c2']['w'], params['c2']['b'], params['bn2'])


if __name__ == "__main__":
    key = jax.random.PRNGKey(0)
    kx, kp = jax.random.split(key)
    N, Cin, H, W = 2, 4, 16, 16
    Cout = 8

    x = jax.random.uniform(kx, (N, Cin, H, W), jnp.float32)
    params = init_double_conv(kp, Cin, Cout)

    fwd = jax.jit(double_conv)
    out = jax.block_until_ready(fwd(params, x))

    assert out.shape == (N, Cout, H, W), out.shape
    assert bool(jnp.isfinite(out).all())

    ref = _ref_double_conv(params, x)
    err = float(jnp.max(jnp.abs(out - ref)))
    assert err < 5e-2, f"max abs err vs reference: {err}"

    print("KERNEL_OK")
</pallas_src>

<mosaic_0001>
module attributes {stable_mosaic.version = 11 : i64} {
  func.func @_conv_gemm_kernel(%arg0: i32, %arg1: i32, %arg2: i32, %arg3: memref<256x128xbf16, #tpu.memory_space<vmem>>, %arg4: memref<128x128xbf16, #tpu.memory_space<vmem>>, %arg5: memref<2x128xf32, #tpu.memory_space<vmem>>, %arg6: memref<256x128xbf16, #tpu.memory_space<vmem>>, %arg7: memref<256x128xf32, #tpu.memory_space<vmem>>) attributes {dimension_semantics = [#tpu.dimension_semantics<parallel>, #tpu.dimension_semantics<parallel>, #tpu.dimension_semantics<arbitrary>], iteration_bounds = array<i64: 2, 1, 1>, scalar_prefetch = 0 : i64, scratch_operands = 1 : i64, tpu.core_type = #tpu.core_type<tc>, window_params = [{transform_indices = @transform_0, window_bounds = array<i64: 256, 128>}, {transform_indices = @transform_1, window_bounds = array<i64: 128, 128>}, {transform_indices = @transform_2, window_bounds = array<i64: 2, 128>}, {transform_indices = @transform_3, window_bounds = array<i64: 256, 128>}]} {
    %c0_i32 = arith.constant 0 : i32
    %0 = arith.cmpi eq, %arg2, %c0_i32 : i32
    %1 = arith.extui %0 : i1 to i32
    %c0_i32_0 = arith.constant 0 : i32
    %2 = arith.cmpi ne, %1, %c0_i32_0 : i32
    scf.if %2 {
      %cst_10 = arith.constant 0.000000e+00 : f32
      %12 = vector.broadcast %cst_10 : f32 to vector<256x128xf32>
      %c0_11 = arith.constant 0 : index
      %c0_12 = arith.constant 0 : index
      %13 = vector.load %arg7[%c0_11, %c0_12] : memref<256x128xf32, #tpu.memory_space<vmem>>, vector<256x128xf32>
      tpu.vector_store %arg7[%c0_11, %c0_12], %12 {strides = array<i32>} : memref<256x128xf32, #tpu.memory_space<vmem>>, vector<256x128xf32>,
    } else {
    }
    %c0 = arith.constant 0 : index
    %c0_1 = arith.constant 0 : index
    %3 = vector.load %arg7[%c0, %c0_1] : memref<256x128xf32, #tpu.memory_space<vmem>>, vector<256x128xf32>
    %c0_2 = arith.constant 0 : index
    %c0_3 = arith.constant 0 : index
    %4 = vector.load %arg3[%c0_2, %c0_3] : memref<256x128xbf16, #tpu.memory_space<vmem>>, vector<256x128xbf16>
    %c0_4 = arith.constant 0 : index
    %c0_5 = arith.constant 0 : index
    %5 = vector.load %arg4[%c0_4, %c0_5] : memref<128x128xbf16, #tpu.memory_space<vmem>>, vector<128x128xbf16>
    %cst = arith.constant dense<0.000000e+00> : vector<256x128xf32>
    %6 = tpu.matmul %4, %5, %cst {dimension_numbers = #tpu.dot_dimension_numbers<[1], [0], [0], [1], [0, 0, 1, 1], [], []>} : vector<256x128xbf16>, vector<128x128xbf16>, vector<256x128xf32> -> vector<256x128xf32>
    %7 = arith.addf %3, %6 : vector<256x128xf32>
    %c0_6 = arith.constant 0 : index
    %c0_7 = arith.constant 0 : index
    %8 = vector.load %arg7[%c0_6, %c0_7] : memref<256x128xf32, #tpu.memory_space<vmem>>, vector<256x128xf32>
    tpu.vector_store %arg7[%c0_6, %c0_7], %7 {strides = array<i32>} : memref<256x128xf32, #tpu.memory_space<vmem>>, vector<256x128xf32>,
    %c0_i32_8 = arith.constant 0 : i32
    %9 = arith.cmpi eq, %arg2, %c0_i32_8 : i32
    %10 = arith.extui %9 : i1 to i32
    %c0_i32_9 = arith.constant 0 : i32
    %11 = arith.cmpi ne, %10, %c0_i32_9 : i32
    scf.if %11 {
      %c0_10 = arith.constant 0 : index
      %c0_11 = arith.constant 0 : index
      %12 = vector.load %arg5[%c0_10, %c0_11] : memref<2x128xf32, #tpu.memory_space<vmem>>, vector<1x128xf32>
      %c1 = arith.constant 1 : index
      %c0_12 = arith.constant 0 : index
      %13 = vector.load %arg5[%c1, %c0_12] : memref<2x128xf32, #tpu.memory_space<vmem>>, vector<1x128xf32>
      %c0_13 = arith.constant 0 : index
      %c0_14 = arith.constant 0 : index
      %14 = vector.load %arg7[%c0_13, %c0_14] : memref<256x128xf32, #tpu.memory_space<vmem>>, vector<256x128xf32>
      %15 = vector.broadcast %12 : vector<1x128xf32> to vector<256x128xf32>
      %16 = arith.mulf %14, %15 : vector<256x128xf32>
      %17 = vector.broadcast %13 : vector<1x128xf32> to vector<256x128xf32>
      %18 = arith.addf %16, %17 : vector<256x128xf32>
      %cst_15 = arith.constant 0.000000e+00 : f32
      %19 = vector.broadcast %cst_15 : f32 to vector<256x128xf32>
      %20 = arith.maximumf %18, %19 : vector<256x128xf32>
      %21 = arith.truncf %20 : vector<256x128xf32> to vector<256x128xbf16>
      %c0_16 = arith.constant 0 : index
      %c0_17 = arith.constant 0 : index
      %22 = vector.load %arg6[%c0_16, %c0_17] : memref<256x128xbf16, #tpu.memory_space<vmem>>, vector<256x128xbf16>
      tpu.vector_store %arg6[%c0_16, %c0_17], %21 {strides = array<i32>} : memref<256x128xbf16, #tpu.memory_space<vmem>>, vector<256x128xbf16>,
    } else {
    }
    return
  }
  func.func @transform_0(%arg0: i32, %arg1: i32, %arg2: i32) -> (i32, i32) {
    %c0_i32 = arith.constant 0 : i32
    return %arg0, %arg2 : i32, i32
  }
  func.func @transform_1(%arg0: i32, %arg1: i32, %arg2: i32) -> (i32, i32) {
    %c0_i32 = arith.constant 0 : i32
    return %arg2, %arg1 : i32, i32
  }
  func.func @transform_2(%arg0: i32, %arg1: i32, %arg2: i32) -> (i32, i32) {
    %c0_i32 = arith.constant 0 : i32
    %c0_i32_0 = arith.constant 0 : i32
    return %c0_i32, %arg1 : i32, i32
  }
  func.func @transform_3(%arg0: i32, %arg1: i32, %arg2: i32) -> (i32, i32) {
    %c0_i32 = arith.constant 0 : i32
    return %arg0, %arg1 : i32, i32
  }
}

module attributes {stable_mosaic.version = 11 : i64} {
  func.func @_conv_gemm_kernel(%arg0: i32, %arg1: i32, %arg2: i32, %arg3: memref<256x128xbf16, #tpu.memory_space<vmem>>, %arg4: memref<128x128xbf16, #tpu.memory_space<vmem>>, %arg5: memref<2x128xf32, #tpu.memory_space<vmem>>, %arg6: memref<256x128xf32, #tpu.memory_space<vmem>>, %arg7: memref<256x128xf32, #tpu.memory_space<vmem>>) attributes {dimension_semantics = [#tpu.dimension_semantics<parallel>, #tpu.dimension_semantics<parallel>, #tpu.dimension_semantics<arbitrary>], iteration_bounds = array<i64: 2, 1, 1>, scalar_prefetch = 0 : i64, scratch_operands = 1 : i64, tpu.core_type = #tpu.core_type<tc>, window_params = [{transform_indices = @transform_0, window_bounds = array<i64: 256, 128>}, {transform_indices = @transform_1, window_bounds = array<i64: 128, 128>}, {transform_indices = @transform_2, window_bounds = array<i64: 2, 128>}, {transform_indices = @transform_3, window_bounds = array<i64: 256, 128>}]} {
    %c0_i32 = arith.constant 0 : i32
    %0 = arith.cmpi eq, %arg2, %c0_i32 : i32
    %1 = arith.extui %0 : i1 to i32
    %c0_i32_0 = arith.constant 0 : i32
    %2 = arith.cmpi ne, %1, %c0_i32_0 : i32
    scf.if %2 {
      %cst_10 = arith.constant 0.000000e+00 : f32
      %12 = vector.broadcast %cst_10 : f32 to vector<256x128xf32>
      %c0_11 = arith.constant 0 : index
      %c0_12 = arith.constant 0 : index
      %13 = vector.load %arg7[%c0_11, %c0_12] : memref<256x128xf32, #tpu.memory_space<vmem>>, vector<256x128xf32>
      tpu.vector_store %arg7[%c0_11, %c0_12], %12 {strides = array<i32>} : memref<256x128xf32, #tpu.memory_space<vmem>>, vector<256x128xf32>,
    } else {
    }
    %c0 = arith.constant 0 : index
    %c0_1 = arith.constant 0 : index
    %3 = vector.load %arg7[%c0, %c0_1] : memref<256x128xf32, #tpu.memory_space<vmem>>, vector<256x128xf32>
    %c0_2 = arith.constant 0 : index
    %c0_3 = arith.constant 0 : index
    %4 = vector.load %arg3[%c0_2, %c0_3] : memref<256x128xbf16, #tpu.memory_space<vmem>>, vector<256x128xbf16>
    %c0_4 = arith.constant 0 : index
    %c0_5 = arith.constant 0 : index
    %5 = vector.load %arg4[%c0_4, %c0_5] : memref<128x128xbf16, #tpu.memory_space<vmem>>, vector<128x128xbf16>
    %cst = arith.constant dense<0.000000e+00> : vector<256x128xf32>
    %6 = tpu.matmul %4, %5, %cst {dimension_numbers = #tpu.dot_dimension_numbers<[1], [0], [0], [1], [0, 0, 1, 1], [], []>} : vector<256x128xbf16>, vector<128x128xbf16>, vector<256x128xf32> -> vector<256x128xf32>
    %7 = arith.addf %3, %6 : vector<256x128xf32>
    %c0_6 = arith.constant 0 : index
    %c0_7 = arith.constant 0 : index
    %8 = vector.load %arg7[%c0_6, %c0_7] : memref<256x128xf32, #tpu.memory_space<vmem>>, vector<256x128xf32>
    tpu.vector_store %arg7[%c0_6, %c0_7], %7 {strides = array<i32>} : memref<256x128xf32, #tpu.memory_space<vmem>>, vector<256x128xf32>,
    %c0_i32_8 = arith.constant 0 : i32
    %9 = arith.cmpi eq, %arg2, %c0_i32_8 : i32
    %10 = arith.extui %9 : i1 to i32
    %c0_i32_9 = arith.constant 0 : i32
    %11 = arith.cmpi ne, %10, %c0_i32_9 : i32
    scf.if %11 {
      %c0_10 = arith.constant 0 : index
      %c0_11 = arith.constant 0 : index
      %12 = vector.load %arg5[%c0_10, %c0_11] : memref<2x128xf32, #tpu.memory_space<vmem>>, vector<1x128xf32>
      %c1 = arith.constant 1 : index
      %c0_12 = arith.constant 0 : index
      %13 = vector.load %arg5[%c1, %c0_12] : memref<2x128xf32, #tpu.memory_space<vmem>>, vector<1x128xf32>
      %c0_13 = arith.constant 0 : index
      %c0_14 = arith.constant 0 : index
      %14 = vector.load %arg7[%c0_13, %c0_14] : memref<256x128xf32, #tpu.memory_space<vmem>>, vector<256x128xf32>
      %15 = vector.broadcast %12 : vector<1x128xf32> to vector<256x128xf32>
      %16 = arith.mulf %14, %15 : vector<256x128xf32>
      %17 = vector.broadcast %13 : vector<1x128xf32> to vector<256x128xf32>
      %18 = arith.addf %16, %17 : vector<256x128xf32>
      %cst_15 = arith.constant 0.000000e+00 : f32
      %19 = vector.broadcast %cst_15 : f32 to vector<256x128xf32>
      %20 = arith.maximumf %18, %19 : vector<256x128xf32>
      %c0_16 = arith.constant 0 : index
      %c0_17 = arith.constant 0 : index
      %21 = vector.load %arg6[%c0_16, %c0_17] : memref<256x128xf32, #tpu.memory_space<vmem>>, vector<256x128xf32>
      tpu.vector_store %arg6[%c0_16, %c0_17], %20 {strides = array<i32>} : memref<256x128xf32, #tpu.memory_space<vmem>>, vector<256x128xf32>,
    } else {
    }
    return
  }
  func.func @transform_0(%arg0: i32, %arg1: i32, %arg2: i32) -> (i32, i32) {
    %c0_i32 = arith.constant 0 : i32
    return %arg0, %arg2 : i32, i32
  }
  func.func @transform_1(%arg0: i32, %arg1: i32, %arg2: i32) -> (i32, i32) {
    %c0_i32 = arith.constant 0 : i32
    return %arg2, %arg1 : i32, i32
  }
  func.func @transform_2(%arg0: i32, %arg1: i32, %arg2: i32) -> (i32, i32) {
    %c0_i32 = arith.constant 0 : i32
    %c0_i32_0 = arith.constant 0 : i32
    return %c0_i32, %arg1 : i32, i32
  }
  func.func @transform_3(%arg0: i32, %arg1: i32, %arg2: i32) -> (i32, i32) {
    %c0_i32 = arith.constant 0 : i32
    return %arg0, %arg1 : i32, i32
  }
}

</mosaic_0001>

<llo_original>
// kernel: double_conv.2
$region0: #{double_conv.2}
  #allocation0 [shape = 'u32[]', space=smem, size = 0x4, offset = 0x4, fixed_abs, tag = 'smem constant byte address 0x4 - core index']
  #allocation1 [shape = 'u32[144,128]{1,0:T(1,128)}', space=vmem, size = 0x12000, scoped, tag = 'internal scratch']
  #allocation2 [shape = 'f32[256,128]{1,0:T(8,128)}', space=vmem, size = 0x20000, scoped, tag = 'scratch operand']
  %s0 = inlined_call_operand.vmem [shape: bf16[512,128], index: 0, kind: input, shape index: {}]
  %s1 = inlined_call_operand.vmem [shape: bf16[128,128], index: 1, kind: input, shape index: {}]
  %s2 = inlined_call_operand.vmem [shape: f32[2,128], index: 2, kind: input, shape index: {}]
  %s3 = inlined_call_operand.vmem [shape: bf16[512,128], index: 3, kind: output, shape index: {}]
  %s4 = sld [smem:[#allocation0]]
  $region53: #{double_conv.2} parent=0
    _
  %s6 = ssub.s32 1, %s4
  %s7 = scalar_select 0, %s6, %s4
  loop: start=0, step=1, limit=4
  $region2: #{double_conv.2} parent=0 // loop_pre_header
    _
  $region3: #{double_conv.2} parent=0 // loop_header
    %s9 = sphi 0, %s13
    %p10 = scmp.ge.s32.totalorder %s9, 4
    %s16 = sphi 0, %s35
    %s17 = sphi 0, %s31
    %s18 = sphi 0, %s27
    %s19 = sphi 0, %s16
    %s20 = sphi 0, %s17
    %s21 = sphi 0, %s18
    %s22 = sphi 0, %s19
    %s23 = sphi 0, %s20
    %s24 = sphi 0, %s21
    %s40 = sphi 0, %s42
    %s43 = sphi 0, %s40
    %s44 = sphi 0, %s43
    %s60 = sphi 0, %s44
    %s68 = sphi 0, %s70
    %s71 = sphi 0, %s68
    %s72 = sphi 0, %s71
    %s88 = sphi 0, %s72
    %s94 = sphi 0, %s96
    %s97 = sphi 0, %s94
    %s98 = sphi 0, %s97
    %s114 = sphi 0, %s98
    %s122 = sphi 0, %s124
    %s125 = sphi 0, %s122
    %s126 = sphi 0, %s125
    %s142 = sphi 0, %s126
  $region4: #{double_conv.2} parent=0 // loop_header_branch
    %12 = sbr.rel (%p10) target = $region8
  $region5: #{double_conv.2} parent=0 // loop_body
    %s14 = ssub.s32 %s9, 1
    %s15 = ssub.s32 %s9, 2
    %s25 = sadd.s32 1, %s18
    %p26 = scmp.ge.s32.totalorder %s25, 1
    %s27 = scalar_select %p26, 0, %s25
    %s28 = sadd.s32 1, %s17
    %s29 = scalar_select %p26, %s28, %s17
    %p30 = scmp.ge.s32.totalorder %s29, 1
    %s31 = scalar_select %p30, 0, %s29
    %s32 = sadd.s32 1, %s16
    %s33 = scalar_select %p30, %s32, %s16
    %p34 = scmp.ge.s32.totalorder %s33, 2
    %s35 = scalar_select %p34, 0, %s33
    %s36 = ssub.s32 %s16, %s35
    %s37 = ssub.s32 %s18, %s27
    %s38 = sor.u32 %s36, %s37
    %p39 = scmp.eq.s32.totalorder %s38, 0
    %s41 = sadd.s32 %s40, 1
    %s42 = scalar_select %p39, %s40, %s41
    %p45 = pneg %p39
    %p46 = scmp.eq.s32.totalorder %s9, 1
    %p47 = por %p45, %p46
    %p48 = scmp.ne.s32.totalorder %s40, %s43
    %p49 = scmp.eq.s32.totalorder %s9, 0
    %p50 = por %p48, %p49
    %p51 = scmp.ne.s32.totalorder %s40, %s43
    %p52 = scmp.eq.s32.totalorder %s14, 1
    %p53 = por %p51, %p52
    %p54 = scmp.ne.s32.totalorder %s43, %s44
    %p55 = scmp.eq.s32.totalorder %s14, 0
    %p56 = por %p54, %p55
    %p57 = scmp.ne.s32.totalorder %s43, %s44
    %p58 = scmp.eq.s32.totalorder %s15, 1
    %p59 = por %p57, %p58
    %p61 = scmp.ne.s32.totalorder %s44, %s60
    %p62 = scmp.eq.s32.totalorder %s15, 0
    %p63 = por %p61, %p62
    %s64 = ssub.s32 %s18, %s27
    %s65 = ssub.s32 %s17, %s31
    %s66 = sor.u32 %s64, %s65
    %p67 = scmp.eq.s32.totalorder %s66, 0
    %s69 = sadd.s32 %s68, 1
    %s70 = scalar_select %p67, %s68, %s69
    %p73 = pneg %p67
    %p74 = scmp.eq.s32.totalorder %s9, 1
    %p75 = por %p73, %p74
    %p76 = scmp.ne.s32.totalorder %s68, %s71
    %p77 = scmp.eq.s32.totalorder %s9, 0
    %p78 = por %p76, %p77
    %p79 = scmp.ne.s32.totalorder %s68, %s71
    %p80 = scmp.eq.s32.totalorder %s14, 1
    %p81 = por %p79, %p80
    %p82 = scmp.ne.s32.totalorder %s71, %s72
    %p83 = scmp.eq.s32.totalorder %s14, 0
    %p84 = por %p82, %p83
    %p85 = scmp.ne.s32.totalorder %s71, %s72
    %p86 = scmp.eq.s32.totalorder %s15, 1
    %p87 = por %p85, %p86
    %p89 = scmp.ne.s32.totalorder %s72, %s88
    %p90 = scmp.eq.s32.totalorder %s15, 0
    %p91 = por %p89, %p90
    %s92 = ssub.s32 %s17, %s31
    %p93 = scmp.eq.s32.totalorder %s92, 0
    %s95 = sadd.s32 %s94, 1
    %s96 = scalar_select %p93, %s94, %s95
    %p99 = pneg %p93
    %p100 = scmp.eq.s32.totalorder %s9, 1
    %p101 = por %p99, %p100
    %p102 = scmp.ne.s32.totalorder %s94, %s97
    %p103 = scmp.eq.s32.totalorder %s9, 0
    %p104 = por %p102, %p103
    %p105 = scmp.ne.s32.totalorder %s94, %s97
    %p106 = scmp.eq.s32.totalorder %s14, 1
    %p107 = por %p105, %p106
    %p108 = scmp.ne.s32.totalorder %s97, %s98
    %p109 = scmp.eq.s32.totalorder %s14, 0
    %p110 = por %p108, %p109
    %p111 = scmp.ne.s32.totalorder %s97, %s98
    %p112 = scmp.eq.s32.totalorder %s15, 1
    %p113 = por %p111, %p112
    %p115 = scmp.ne.s32.totalorder %s98, %s114
    %p116 = scmp.eq.s32.totalorder %s15, 0
    %p117 = por %p115, %p116
    %s118 = ssub.s32 %s16, %s35
    %s119 = ssub.s32 %s17, %s31
    %s120 = sor.u32 %s118, %s119
    %p121 = scmp.eq.s32.totalorder %s120, 0
    %s123 = sadd.s32 %s122, 1
    %s124 = scalar_select %p121, %s122, %s123
    %p127 = pneg %p121
    %p128 = scmp.eq.s32.totalorder %s9, 1
    %p129 = por %p127, %p128
    %p130 = scmp.ne.s32.totalorder %s122, %s125
    %p131 = scmp.eq.s32.totalorder %s9, 0
    %p132 = por %p130, %p131
    %p133 = scmp.ne.s32.totalorder %s122, %s125
    %p134 = scmp.eq.s32.totalorder %s14, 1
    %p135 = por %p133, %p134
    %p136 = scmp.ne.s32.totalorder %s125, %s126
    %p137 = scmp.eq.s32.totalorder %s14, 0
    %p138 = por %p136, %p137
    %p139 = scmp.ne.s32.totalorder %s125, %s126
    %p140 = scmp.eq.s32.totalorder %s15, 1
    %p141 = por %p139, %p140
    %p143 = scmp.ne.s32.totalorder %s126, %s142
    %p144 = scmp.eq.s32.totalorder %s15, 0
    %p145 = por %p143, %p144
    %p146 = scmp.le.s32.totalorder 1, %s9
    %p147 = scmp.lt.s32.totalorder %s9, 3
    %p148 = pnand %p146, %p147
    %p149 = pneg %p148
    // Predicated region
    $region9: #{double_conv.2} parent=5 // pred_check
      _
    $region10: #{double_conv.2} parent=5 // pred_check_branch
      %151 = sbr.rel (%p148) target = $region12
    $region11: #{double_conv.2} parent=5 // pred_region
      %s152 = ssub.s32 %s9, 1
      // Predicated region
      $region13: #{double_conv.2} parent=11 // pred_check
        %p153 = pneg %p84
      $region14: #{double_conv.2} parent=11 // pred_check_branch
        %155 = sbr.rel (%p153) target = $region16
      $region15: #{double_conv.2} parent=11 // pred_region
        %s156 = smul.u32 16, %s21
        %p157 = scmp.lt.s32.totalorder %s156, 15
        %s158 = scalar_select %p157, %s156, 15
        %p159 = scmp.lt.s32.totalorder %s20, 0
        %s160 = scalar_select %p159, %s20, 0
        %s161 = sadd.s32 %s160, %s158
        %s162 = smul.addr %s161, 4
        %s163 = scalar_lea.vmem %s1, %s162
        %s164 = smul.u32 16, %s21
      $region16: #{double_conv.2} parent=11 // pred_fallthru
        _
      // Predicated region
      $region17: #{double_conv.2} parent=11 // pred_check
        %p165 = pneg %p110
      $region18: #{double_conv.2} parent=11 // pred_check_branch
        %167 = sbr.rel (%p165) target = $region20
      $region19: #{double_conv.2} parent=11 // pred_region
        %p168 = scmp.lt.s32.totalorder %s20, 0
        %s169 = scalar_select %p168, %s20, 0
        %s170 = smul.addr %s169, 2
        %s171 = scalar_lea.vmem %s2, %s170
      $region20: #{double_conv.2} parent=11 // pred_fallthru
        _
    $region12: #{double_conv.2} parent=5 // pred_fallthru
      _
    %p172 = scmp.lt.s32.totalorder %s9, 2
    // Predicated region
    $region21: #{double_conv.2} parent=5 // pred_check
      %p173 = pneg %p172
    $region22: #{double_conv.2} parent=5 // pred_check_branch
      %175 = sbr.rel (%p173) target = $region24
    $region23: #{double_conv.2} parent=5 // pred_region
      // Predicated region
      $region25: #{double_conv.2} parent=23 // pred_check
        %p176 = pneg %p50
      $region26: #{double_conv.2} parent=23 // pred_check_branch
        %178 = sbr.rel (%p176) target = $region28
      $region27: #{double_conv.2} parent=23 // pred_region
        %s179 = smul.u32 32, %s16
        %p180 = scmp.lt.s32.totalorder %s179, 63
        %s181 = scalar_select %p180, %s179, 63
        %p182 = scmp.lt.s32.totalorder %s18, 0
        %s183 = scalar_select %p182, %s18, 0
        %s184 = sadd.s32 %s183, %s181
        %s185 = smul.addr %s184, 4
        %s186 = scalar_lea.vmem %s0, %s185
        %s187 = smul.u32 32, %s16
      $region28: #{double_conv.2} parent=23 // pred_fallthru
        _
    $region24: #{double_conv.2} parent=5 // pred_fallthru
      _
    %p188 = scmp.le.s32.totalorder 1, %s9
    %p189 = scmp.lt.s32.totalorder %s9, 3
    %p190 = pnand %p188, %p189
    %p191 = pneg %p190
    // Predicated region
    $region29: #{double_conv.2} parent=5 // pred_check
      _
    $region30: #{double_conv.2} parent=5 // pred_check_branch
      %193 = sbr.rel (%p190) target = $region32
    $region31: #{double_conv.2} parent=5 // pred_region
      %s194 = ssub.s32 %s9, 1
      %s195 = smul.u32 32, %s19
      %p196 = scmp.lt.s32.totalorder %s195, 63
      %s197 = scalar_select %p196, %s195, 63
      %p198 = scmp.lt.s32.totalorder %s21, 0
      %s199 = scalar_select %p198, %s21, 0
      %s200 = sadd.s32 %s199, %s197
      %s201 = smul.addr %s200, 4
      %s202 = scalar_lea.vmem %s0, %s201
      %p203 = pneg %p56
      %p204 = pneg %p53
      %s205 = smul.u32 16, %s21
      %p206 = scmp.lt.s32.totalorder %s205, 15
      %s207 = scalar_select %p206, %s205, 15
      %p208 = scmp.lt.s32.totalorder %s20, 0
      %s209 = scalar_select %p208, %s20, 0
      %s210 = sadd.s32 %s209, %s207
      %s211 = smul.addr %s210, 4
      %s212 = scalar_lea.vmem %s1, %s211
      %p213 = pneg %p84
      %p214 = pneg %p81
      %p215 = scmp.lt.s32.totalorder %s20, 0
      %s216 = scalar_select %p215, %s20, 0
      %s217 = smul.addr %s216, 2
      %s218 = scalar_lea.vmem %s2, %s217
      %p219 = pneg %p110
      %p220 = pneg %p107
      %p221 = pneg %p138
      %p222 = pneg %p135
      %s223 = smul.u32 32, %s19
      %p224 = scmp.lt.s32.totalorder %s223, 63
      %s225 = scalar_select %p224, %s223, 63
      %p226 = scmp.lt.s32.totalorder %s20, 0
      %s227 = scalar_select %p226, %s20, 0
      %s228 = sadd.s32 %s227, %s225
      %s229 = smul.addr %s228, 4
      %s230 = scalar_lea.vmem %s3, %s229
      %s231 = smul.u32 32, %s19
      %p232 = scmp.lt.s32.totalorder %s231, 63
      %s233 = scalar_select %p232, %s231, 63
      %p234 = scmp.lt.s32.totalorder %s21, 0
      %s235 = scalar_select %p234, %s21, 0
      %s236 = sadd.s32 %s235, %s233
      %s237 = smul.addr %s236, 4
      %s238 = scalar_lea.vmem %s0, %s237
      %s239 = smul.u32 32, %s19
      %s240 = smul.u32 16, %s21
      %p241 = scmp.lt.s32.totalorder %s240, 15
      %s242 = scalar_select %p241, %s240, 15
      %p243 = scmp.lt.s32.totalorder %s20, 0
      %s244 = scalar_select %p243, %s20, 0
      %s245 = sadd.s32 %s244, %s242
      %s246 = smul.addr %s245, 4
      %s247 = scalar_lea.vmem %s1, %s246
      %s248 = smul.u32 16, %s21
      %p249 = scmp.lt.s32.totalorder %s20, 0
      %s250 = scalar_select %p249, %s20, 0
      %s251 = smul.addr %s250, 2
      %s252 = scalar_lea.vmem %s2, %s251
      %s253 = smul.u32 32, %s19
      %p254 = scmp.lt.s32.totalorder %s253, 63
      %s255 = scalar_select %p254, %s253, 63
      %p256 = scmp.lt.s32.totalorder %s20, 0
      %s257 = scalar_select %p256, %s20, 0
      %s258 = sadd.s32 %s257, %s255
      %s259 = smul.addr %s258, 4
      %s260 = scalar_lea.vmem %s3, %s259
      %s261 = smul.u32 32, %s19
      %p263 = scmp.eq.s32.totalorder %s21, 0
      // Predicated region
      $region33: #{double_conv.2} parent=31 // pred_check
        %p264 = pneg %p263
      $region34: #{double_conv.2} parent=31 // pred_check_branch
        %266 = sbr.rel (%p264) target = $region36
      $region35: #{double_conv.2} parent=31 // pred_region
        %267 = vst [vmem:[#allocation2] sm:$0xff] 0.0
        %268 = vst [vmem:[#allocation2 + $0x8] sm:$0xff] 0.0
        %269 = vst [vmem:[#allocation2 + $0x10] sm:$0xff] 0.0
        %270 = vst [vmem:[#allocation2 + $0x18] sm:$0xff] 0.0
        %271 = vst [vmem:[#allocation2 + $0x20] sm:$0xff] 0.0
        %272 = vst [vmem:[#allocation2 + $0x28] sm:$0xff] 0.0
        %273 = vst [vmem:[#allocation2 + $0x30] sm:$0xff] 0.0
        %274 = vst [vmem:[#allocation2 + $0x38] sm:$0xff] 0.0
        %275 = vst [vmem:[#allocation2 + $0x40] sm:$0xff] 0.0
        %276 = vst [vmem:[#allocation2 + $0x48] sm:$0xff] 0.0
        %277 = vst [vmem:[#allocation2 + $0x50] sm:$0xff] 0.0
        %278 = vst [vmem:[#allocation2 + $0x58] sm:$0xff] 0.0
        %279 = vst [vmem:[#allocation2 + $0x60] sm:$0xff] 0.0
        %280 = vst [vmem:[#allocation2 + $0x68] sm:$0xff] 0.0
        %281 = vst [vmem:[#allocation2 + $0x70] sm:$0xff] 0.0
        %282 = vst [vmem:[#allocation2 + $0x78] sm:$0xff] 0.0
        %283 = vst [vmem:[#allocation2 + $0x80] sm:$0xff] 0.0
        %284 = vst [vmem:[#allocation2 + $0x88] sm:$0xff] 0.0
        %285 = vst [vmem:[#allocation2 + $0x90] sm:$0xff] 0.0
        %286 = vst [vmem:[#allocation2 + $0x98] sm:$0xff] 0.0
        %287 = vst [vmem:[#allocation2 + $0xa0] sm:$0xff] 0.0
        %288 = vst [vmem:[#allocation2 + $0xa8] sm:$0xff] 0.0
        %289 = vst [vmem:[#allocation2 + $0xb0] sm:$0xff] 0.0
        %290 = vst [vmem:[#allocation2 + $0xb8] sm:$0xff] 0.0
        %291 = vst [vmem:[#allocation2 + $0xc0] sm:$0xff] 0.0
        %292 = vst [vmem:[#allocation2 + $0xc8] sm:$0xff] 0.0
        %293 = vst [vmem:[#allocation2 + $0xd0] sm:$0xff] 0.0
        %294 = vst [vmem:[#allocation2 + $0xd8] sm:$0xff] 0.0
        %295 = vst [vmem:[#allocation2 + $0xe0] sm:$0xff] 0.0
        %296 = vst [vmem:[#allocation2 + $0xe8] sm:$0xff] 0.0
        %297 = vst [vmem:[#allocation2 + $0xf0] sm:$0xff] 0.0
        %298 = vst [vmem:[#allocation2 + $0xf8] sm:$0xff] 0.0
      $region36: #{double_conv.2} parent=31 // pred_fallthru
        _
      %v299 = vld [vmem:[#allocation2] sm:$0xff]
      %v300 = vld [vmem:[#allocation2 + $0x8] sm:$0xff]
      %v301 = vld [vmem:[#allocation2 + $0x10] sm:$0xff]
      %v302 = vld [vmem:[#allocation2 + $0x18] sm:$0xff]
      %v303 = vld [vmem:[#allocation2 + $0x20] sm:$0xff]
      %v304 = vld [vmem:[#allocation2 + $0x28] sm:$0xff]
      %v305 = vld [vmem:[#allocation2 + $0x30] sm:$0xff]
      %v306 = vld [vmem:[#allocation2 + $0x38] sm:$0xff]
      %v307 = vld [vmem:[#allocation2 + $0x40] sm:$0xff]
      %v308 = vld [vmem:[#allocation2 + $0x48] sm:$0xff]
      %v309 = vld [vmem:[#allocation2 + $0x50] sm:$0xff]
      %v310 = vld [vmem:[#allocation2 + $0x58] sm:$0xff]
      %v311 = vld [vmem:[#allocation2 + $0x60] sm:$0xff]
      %v312 = vld [vmem:[#allocation2 + $0x68] sm:$0xff]
      %v313 = vld [vmem:[#allocation2 + $0x70] sm:$0xff]
      %v314 = vld [vmem:[#allocation2 + $0x78] sm:$0xff]
      %v315 = vld [vmem:[#allocation2 + $0x80] sm:$0xff]
      %v316 = vld [vmem:[#allocation2 + $0x88] sm:$0xff]
      %v317 = vld [vmem:[#allocation2 + $0x90] sm:$0xff]
      %v318 = vld [vmem:[#allocation2 + $0x98] sm:$0xff]
      %v319 = vld [vmem:[#allocation2 + $0xa0] sm:$0xff]
      %v320 = vld [vmem:[#allocation2 + $0xa8] sm:$0xff]
      %v321 = vld [vmem:[#allocation2 + $0xb0] sm:$0xff]
      %v322 = vld [vmem:[#allocation2 + $0xb8] sm:$0xff]
      %v323 = vld [vmem:[#allocation2 + $0xc0] sm:$0xff]
      %v324 = vld [vmem:[#allocation2 + $0xc8] sm:$0xff]
      %v325 = vld [vmem:[#allocation2 + $0xd0] sm:$0xff]
      %v326 = vld [vmem:[#allocation2 + $0xd8] sm:$0xff]
      %v327 = vld [vmem:[#allocation2 + $0xe0] sm:$0xff]
      %v328 = vld [vmem:[#allocation2 + $0xe8] sm:$0xff]
      %v329 = vld [vmem:[#allocation2 + $0xf0] sm:$0xff]
      %v330 = vld [vmem:[#allocation2 + $0xf8] sm:$0xff]
      %v331 = vld [vmem:[%s238] sm:$0xf]
      %v332 = vld [vmem:[%s238 + $0x4] sm:$0xf]
      %v333 = vld [vmem:[%s238 + $0x8] sm:$0xf]
      %v334 = vld [vmem:[%s238 + $0xc] sm:$0xf]
      %v335 = vld [vmem:[%s238 + $0x10] sm:$0xf]
      %v336 = vld [vmem:[%s238 + $0x14] sm:$0xf]
      %v337 = vld [vmem:[%s238 + $0x18] sm:$0xf]
      %v338 = vld [vmem:[%s238 + $0x1c] sm:$0xf]
      %v339 = vld [vmem:[%s238 + $0x20] sm:$0xf]
      %v340 = vld [vmem:[%s238 + $0x24] sm:$0xf]
      %v341 = vld [vmem:[%s238 + $0x28] sm:$0xf]
      %v342 = vld [vmem:[%s238 + $0x2c] sm:$0xf]
      %v343 = vld [vmem:[%s238 + $0x30] sm:$0xf]
      %v344 = vld [vmem:[%s238 + $0x34] sm:$0xf]
      %v345 = vld [vmem:[%s238 + $0x38] sm:$0xf]
      %v346 = vld [vmem:[%s238 + $0x3c] sm:$0xf]
      %v347 = vld [vmem:[%s238 + $0x40] sm:$0xf]
      %v348 = vld [vmem:[%s238 + $0x44] sm:$0xf]
      %v349 = vld [vmem:[%s238 + $0x48] sm:$0xf]
      %v350 = vld [vmem:[%s238 + $0x4c] sm:$0xf]
      %v351 = vld [vmem:[%s238 + $0x50] sm:$0xf]
      %v352 = vld [vmem:[%s238 + $0x54] sm:$0xf]
      %v353 = vld [vmem:[%s238 + $0x58] sm:$0xf]
      %v354 = vld [vmem:[%s238 + $0x5c] sm:$0xf]
      %v355 = vld [vmem:[%s238 + $0x60] sm:$0xf]
      %v356 = vld [vmem:[%s238 + $0x64] sm:$0xf]
      %v357 = vld [vmem:[%s238 + $0x68] sm:$0xf]
      %v358 = vld [vmem:[%s238 + $0x6c] sm:$0xf]
      %v359 = vld [vmem:[%s238 + $0x70] sm:$0xf]
      %v360 = vld [vmem:[%s238 + $0x74] sm:$0xf]
      %v361 = vld [vmem:[%s238 + $0x78] sm:$0xf]
      %v362 = vld [vmem:[%s238 + $0x7c] sm:$0xf]
      %v363 = vld [vmem:[%s247] sm:$0xf]
      %v364 = vld [vmem:[%s247 + $0x4] sm:$0xf]
      %v365 = vld [vmem:[%s247 + $0x8] sm:$0xf]
      %v366 = vld [vmem:[%s247 + $0xc] sm:$0xf]
      %v367 = vld [vmem:[%s247 + $0x10] sm:$0xf]
      %v368 = vld [vmem:[%s247 + $0x14] sm:$0xf]
      %v369 = vld [vmem:[%s247 + $0x18] sm:$0xf]
      %v370 = vld [vmem:[%s247 + $0x1c] sm:$0xf]
      %v371 = vld [vmem:[%s247 + $0x20] sm:$0xf]
      %v372 = vld [vmem:[%s247 + $0x24] sm:$0xf]
      %v373 = vld [vmem:[%s247 + $0x28] sm:$0xf]
      %v374 = vld [vmem:[%s247 + $0x2c] sm:$0xf]
      %v375 = vld [vmem:[%s247 + $0x30] sm:$0xf]
      %v376 = vld [vmem:[%s247 + $0x34] sm:$0xf]
      %v377 = vld [vmem:[%s247 + $0x38] sm:$0xf]
      %v378 = vld [vmem:[%s247 + $0x3c] sm:$0xf]
      %v411 = vunpack.c.l.b16 %v331
      %v412 = vunpack.c.l.b16 %v332
      %v413 = vunpack.c.l.b16 %v333
      %v414 = vunpack.c.l.b16 %v334
      %v415 = vunpack.c.l.b16 %v335
      %v416 = vunpack.c.l.b16 %v336
      %v417 = vunpack.c.l.b16 %v337
      %v418 = vunpack.c.l.b16 %v338
      %v419 = vunpack.c.l.b16 %v339
      %v420 = vunpack.c.l.b16 %v340
      %v421 = vunpack.c.l.b16 %v341
      %v422 = vunpack.c.l.b16 %v342
      %v423 = vunpack.c.l.b16 %v343
      %v424 = vunpack.c.l.b16 %v344
      %v425 = vunpack.c.l.b16 %v345
      %v426 = vunpack.c.l.b16 %v346
      %v427 = vunpack.c.l.b16 %v347
      %v428 = vunpack.c.l.b16 %v348
      %v429 = vunpack.c.l.b16 %v349
      %v430 = vunpack.c.l.b16 %v350
      %v431 = vunpack.c.l.b16 %v351
      %v432 = vunpack.c.l.b16 %v352
      %v433 = vunpack.c.l.b16 %v353
      %v434 = vunpack.c.l.b16 %v354
      %v435 = vunpack.c.l.b16 %v355
      %v436 = vunpack.c.l.b16 %v356
      %v437 = vunpack.c.l.b16 %v357
      %v438 = vunpack.c.l.b16 %v358
      %v439 = vunpack.c.l.b16 %v359
      %v440 = vunpack.c.l.b16 %v360
      %v441 = vunpack.c.l.b16 %v361
      %v442 = vunpack.c.l.b16 %v362
      %v443 = vpack.c.b16 %v412, %v411
      %v444 = vpack.c.b16 %v414, %v413
      %v445 = vpack.c.b16 %v416, %v415
      %v446 = vpack.c.b16 %v418, %v417
      %v447 = vpack.c.b16 %v420, %v419
      %v448 = vpack.c.b16 %v422, %v421
      %v449 = vpack.c.b16 %v424, %v423
      %v450 = vpack.c.b16 %v426, %v425
      %v451 = vpack.c.b16 %v428, %v427
      %v452 = vpack.c.b16 %v430, %v429
      %v453 = vpack.c.b16 %v432, %v431
      %v454 = vpack.c.b16 %v434, %v433
      %v455 = vpack.c.b16 %v436, %v435
      %v456 = vpack.c.b16 %v438, %v437
      %v457 = vpack.c.b16 %v440, %v439
      %v458 = vpack.c.b16 %v442, %v441
      %v491 = vunpack.c.l.b16 %v363
      %v492 = vunpack.c.l.b16 %v364
      %v493 = vunpack.c.l.b16 %v365
      %v494 = vunpack.c.l.b16 %v366
      %v495 = vunpack.c.l.b16 %v367
      %v496 = vunpack.c.l.b16 %v368
      %v497 = vunpack.c.l.b16 %v369
      %v498 = vunpack.c.l.b16 %v370
      %v499 = vunpack.c.l.b16 %v371
      %v500 = vunpack.c.l.b16 %v372
      %v501 = vunpack.c.l.b16 %v373
      %v502 = vunpack.c.l.b16 %v374
      %v503 = vunpack.c.l.b16 %v375
      %v504 = vunpack.c.l.b16 %v376
      %v505 = vunpack.c.l.b16 %v377
      %v506 = vunpack.c.l.b16 %v378
      %v507 = vpack.c.b16 %v492, %v491
      %v508 = vpack.c.b16 %v494, %v493
      %v509 = vpack.c.b16 %v496, %v495
      %v510 = vpack.c.b16 %v498, %v497
      %v511 = vpack.c.b16 %v500, %v499
      %v512 = vpack.c.b16 %v502, %v501
      %v513 = vpack.c.b16 %v504, %v503
      %v514 = vpack.c.b16 %v506, %v505
      %523 = vmatprep.subr.bf16.mxu0 0
      %524 = vmatpush1.bf16.msra.mxu0 %v507
      %525 = vmatprep.subr.bf16.mxu0 0
      %526 = vmatpush1.bf16.msra.mxu0 %v508
      %527 = vmatprep.subr.bf16.mxu0 0
      %528 = vmatpush1.bf16.msra.mxu0 %v509
      %529 = vmatprep.subr.bf16.mxu0 0
      %530 = vmatpush1.bf16.msra.mxu0 %v510
      %531 = vmatprep.subr.bf16.mxu0 0
      %532 = vmatpush1.bf16.msra.mxu0 %v511
      %533 = vmatprep.subr.bf16.mxu0 0
      %534 = vmatpush1.bf16.msra.mxu0 %v512
      %535 = vmatprep.subr.bf16.mxu0 0
      %536 = vmatpush1.bf16.msra.mxu0 %v513
      %537 = vmatprep.subr.bf16.mxu0 0
      %538 = vmatpush1.bf16.msra.mxu0 %v514
      %539 = vmatprep.subr.bf16.mxu0 0
      %540 = vmatpush1.bf16.msra.mxu0 0
      %541 = vmatprep.subr.bf16.mxu0 0
      %542 = vmatpush1.bf16.msra.mxu0 0
      %543 = vmatprep.subr.bf16.mxu0 0
      %544 = vmatpush1.bf16.msra.mxu0 0
      %545 = vmatprep.subr.bf16.mxu0 0
      %546 = vmatpush1.bf16.msra.mxu0 0
      %547 = vmatprep.subr.bf16.mxu0 0
      %548 = vmatpush1.bf16.msra.mxu0 0
      %549 = vmatprep.subr.bf16.mxu0 0
      %550 = vmatpush1.bf16.msra.mxu0 0
      %551 = vmatprep.subr.bf16.mxu0 0
      %552 = vmatpush1.bf16.msra.mxu0 0
      %553 = vmatprep.subr.bf16.mxu0 0
      %554 = vmatpush1.bf16.msra.mxu0 0
      %555 = vmatprep.mubr.bf16.mxu0 0
      %556 = vmatmul.mubr.bf16.gmra.mrb[0].mxu0 %v443
      %v557 = vpop.f32.mrb[0].mxu0
      %v558 = vadd.f32 0.0, %v557
      %v559 = vpop.f32.mrb[0].mxu0
      %v560 = vpop.f32.mrb[0].mxu0
      %v561 = vadd.f32 0.0, %v560
      %v562 = vpop.f32.mrb[0].mxu0
      %563 = vmatprep.mubr.bf16.mxu0 0
      %564 = vmatmul.mubr.bf16.gmra.mrb[0].mxu0 %v444
      %v565 = vpop.f32.mrb[0].mxu0
      %v566 = vadd.f32 0.0, %v565
      %v567 = vpop.f32.mrb[0].mxu0
      %v568 = vpop.f32.mrb[0].mxu0
      %v569 = vadd.f32 0.0, %v568
      %v570 = vpop.f32.mrb[0].mxu0
      %571 = vmatprep.mubr.bf16.mxu0 0
      %572 = vmatmul.mubr.bf16.gmra.mrb[0].mxu0 %v445
      %v573 = vpop.f32.mrb[0].mxu0
      %v574 = vadd.f32 0.0, %v573
      %v575 = vpop.f32.mrb[0].mxu0
      %v576 = vpop.f32.mrb[0].mxu0
      %v577 = vadd.f32 0.0, %v576
      %v578 = vpop.f32.mrb[0].mxu0
      %579 = vmatprep.mubr.bf16.mxu0 0
      %580 = vmatmul.mubr.bf16.gmra.mrb[0].mxu0 %v446
      %v581 = vpop.f32.mrb[0].mxu0
      %v582 = vadd.f32 0.0, %v581
      %v583 = vpop.f32.mrb[0].mxu0
      %v584 = vpop.f32.mrb[0].mxu0
      %v585 = vadd.f32 0.0, %v584
      %v586 = vpop.f32.mrb[0].mxu0
      %587 = vmatprep.mubr.bf16.mxu0 0
      %588 = vmatmul.mubr.bf16.gmra.mrb[0].mxu0 %v447
      %v589 = vpop.f32.mrb[0].mxu0
      %v590 = vadd.f32 0.0, %v589
      %v591 = vpop.f32.mrb[0].mxu0
      %v592 = vpop.f32.mrb[0].mxu0
      %v593 = vadd.f32 0.0, %v592
      %v594 = vpop.f32.mrb[0].mxu0
      %595 = vmatprep.mubr.bf16.mxu0 0
      %596 = vmatmul.mubr.bf16.gmra.mrb[0].mxu0 %v448
      %v597 = vpop.f32.mrb[0].mxu0
      %v598 = vadd.f32 0.0, %v597
      %v599 = vpop.f32.mrb[0].mxu0
      %v600 = vpop.f32.mrb[0].mxu0
      %v601 = vadd.f32 0.0, %v600
      %v602 = vpop.f32.mrb[0].mxu0
      %603 = vmatprep.mubr.bf16.mxu0 0
      %604 = vmatmul.mubr.bf16.gmra.mrb[0].mxu0 %v449
      %v605 = vpop.f32.mrb[0].mxu0
      %v606 = vadd.f32 0.0, %v605
      %v607 = vpop.f32.mrb[0].mxu0
      %v608 = vpop.f32.mrb[0].mxu0
      %v609 = vadd.f32 0.0, %v608
      %v610 = vpop.f32.mrb[0].mxu0
      %611 = vmatprep.mubr.bf16.mxu0 0
      %612 = vmatmul.mubr.bf16.gmra.mrb[0].mxu0 %v450
      %v613 = vpop.f32.mrb[0].mxu0
      %v614 = vadd.f32 0.0, %v613
      %v615 = vpop.f32.mrb[0].mxu0
      %v616 = vpop.f32.mrb[0].mxu0
      %v617 = vadd.f32 0.0, %v616
      %v618 = vpop.f32.mrb[0].mxu0
      %619 = vmatprep.mubr.bf16.mxu0 0
      %620 = vmatmul.mubr.bf16.gmra.mrb[0].mxu0 %v451
      %v621 = vpop.f32.mrb[0].mxu0
      %v622 = vadd.f32 0.0, %v621
      %v623 = vpop.f32.mrb[0].mxu0
      %v624 = vpop.f32.mrb[0].mxu0
      %v625 = vadd.f32 0.0, %v624
      %v626 = vpop.f32.mrb[0].mxu0
      %627 = vmatprep.mubr.bf16.mxu0 0
      %628 = vmatmul.mubr.bf16.gmra.mrb[0].mxu0 %v452
      %v629 = vpop.f32.mrb[0].mxu0
      %v630 = vadd.f32 0.0, %v629
      %v631 = vpop.f32.mrb[0].mxu0
      %v632 = vpop.f32.mrb[0].mxu0
      %v633 = vadd.f32 0.0, %v632
      %v634 = vpop.f32.mrb[0].mxu0
      %635 = vmatprep.mubr.bf16.mxu0 0
      %636 = vmatmul.mubr.bf16.gmra.mrb[0].mxu0 %v453
      %v637 = vpop.f32.mrb[0].mxu0
      %v638 = vadd.f32 0.0, %v637
      %v639 = vpop.f32.mrb[0].mxu0
      %v640 = vpop.f32.mrb[0].mxu0
      %v641 = vadd.f32 0.0, %v640
      %v642 = vpop.f32.mrb[0].mxu0
      %643 = vmatprep.mubr.bf16.mxu0 0
      %644 = vmatmul.mubr.bf16.gmra.mrb[0].mxu0 %v454
      %v645 = vpop.f32.mrb[0].mxu0
      %v646 = vadd.f32 0.0, %v645
      %v647 = vpop.f32.mrb[0].mxu0
      %v648 = vpop.f32.mrb[0].mxu0
      %v649 = vadd.f32 0.0, %v648
      %v650 = vpop.f32.mrb[0].mxu0
      %651 = vmatprep.mubr.bf16.mxu0 0
      %652 = vmatmul.mubr.bf16.gmra.mrb[0].mxu0 %v455
      %v653 = vpop.f32.mrb[0].mxu0
      %v654 = vadd.f32 0.0, %v653
      %v655 = vpop.f32.mrb[0].mxu0
      %v656 = vpop.f32.mrb[0].mxu0
      %v657 = vadd.f32 0.0, %v656
      %v658 = vpop.f32.mrb[0].mxu0
      %659 = vmatprep.mubr.bf16.mxu0 0
      %660 = vmatmul.mubr.bf16.gmra.mrb[0].mxu0 %v456
      %v661 = vpop.f32.mrb[0].mxu0
      %v662 = vadd.f32 0.0, %v661
      %v663 = vpop.f32.mrb[0].mxu0
      %v664 = vpop.f32.mrb[0].mxu0
      %v665 = vadd.f32 0.0, %v664
      %v666 = vpop.f32.mrb[0].mxu0
      %667 = vmatprep.mubr.bf16.mxu0 0
      %668 = vmatmul.mubr.bf16.gmra.mrb[0].mxu0 %v457
      %v669 = vpop.f32.mrb[0].mxu0
      %v670 = vadd.f32 0.0, %v669
      %v671 = vpop.f32.mrb[0].mxu0
      %v672 = vpop.f32.mrb[0].mxu0
      %v673 = vadd.f32 0.0, %v672
      %v674 = vpop.f32.mrb[0].mxu0
      %675 = vmatprep.mubr.bf16.mxu0 0
      %676 = vmatmul.mubr.bf16.gmra.mrb[0].mxu0 %v458
      %v677 = vpop.f32.mrb[0].mxu0
      %v678 = vadd.f32 0.0, %v677
      %v679 = vpop.f32.mrb[0].mxu0
      %v680 = vpop.f32.mrb[0].mxu0
      %v681 = vadd.f32 0.0, %v680
      %v682 = vpop.f32.mrb[0].mxu0
      %683 = vdwg.mxu0
      %v684 = vadd.f32 %v299, %v558
      %v685 = vadd.f32 %v300, %v561
      %v686 = vadd.f32 %v301, %v566
      %v687 = vadd.f32 %v302, %v569
      %v688 = vadd.f32 %v303, %v574
      %v689 = vadd.f32 %v304, %v577
      %v690 = vadd.f32 %v305, %v582
      %v691 = vadd.f32 %v306, %v585
      %v692 = vadd.f32 %v307, %v590
      %v693 = vadd.f32 %v308, %v593
      %v694 = vadd.f32 %v309, %v598
      %v695 = vadd.f32 %v310, %v601
      %v696 = vadd.f32 %v311, %v606
      %v697 = vadd.f32 %v312, %v609
      %v698 = vadd.f32 %v313, %v614
      %v699 = vadd.f32 %v314, %v617
      %v700 = vadd.f32 %v315, %v622
      %v701 = vadd.f32 %v316, %v625
      %v702 = vadd.f32 %v317, %v630
      %v703 = vadd.f32 %v318, %v633
      %v704 = vadd.f32 %v319, %v638
      %v705 = vadd.f32 %v320, %v641
      %v706 = vadd.f32 %v321, %v646
      %v707 = vadd.f32 %v322, %v649
      %v708 = vadd.f32 %v323, %v654
      %v709 = vadd.f32 %v324, %v657
      %v710 = vadd.f32 %v325, %v662
      %v711 = vadd.f32 %v326, %v665
      %v712 = vadd.f32 %v327, %v670
      %v713 = vadd.f32 %v328, %v673
      %v714 = vadd.f32 %v329, %v678
      %v715 = vadd.f32 %v330, %v681
      %716 = vst [vmem:[#allocation2] sm:$0xff] %v684
      %717 = vst [vmem:[#allocation2 + $0x8] sm:$0xff] %v685
      %718 = vst [vmem:[#allocation2 + $0x10] sm:$0xff] %v686
      %719 = vst [vmem:[#allocation2 + $0x18] sm:$0xff] %v687
      %720 = vst [vmem:[#allocation2 + $0x20] sm:$0xff] %v688
      %721 = vst [vmem:[#allocation2 + $0x28] sm:$0xff] %v689
      %722 = vst [vmem:[#allocation2 + $0x30] sm:$0xff] %v690
      %723 = vst [vmem:[#allocation2 + $0x38] sm:$0xff] %v691
      %724 = vst [vmem:[#allocation2 + $0x40] sm:$0xff] %v692
      %725 = vst [vmem:[#allocation2 + $0x48] sm:$0xff] %v693
      %726 = vst [vmem:[#allocation2 + $0x50] sm:$0xff] %v694
      %727 = vst [vmem:[#allocation2 + $0x58] sm:$0xff] %v695
      %728 = vst [vmem:[#allocation2 + $0x60] sm:$0xff] %v696
      %729 = vst [vmem:[#allocation2 + $0x68] sm:$0xff] %v697
      %730 = vst [vmem:[#allocation2 + $0x70] sm:$0xff] %v698
      %731 = vst [vmem:[#allocation2 + $0x78] sm:$0xff] %v699
      %732 = vst [vmem:[#allocation2 + $0x80] sm:$0xff] %v700
      %733 = vst [vmem:[#allocation2 + $0x88] sm:$0xff] %v701
      %734 = vst [vmem:[#allocation2 + $0x90] sm:$0xff] %v702
      %735 = vst [vmem:[#allocation2 + $0x98] sm:$0xff] %v703
      %736 = vst [vmem:[#allocation2 + $0xa0] sm:$0xff] %v704
      %737 = vst [vmem:[#allocation2 + $0xa8] sm:$0xff] %v705
      %738 = vst [vmem:[#allocation2 + $0xb0] sm:$0xff] %v706
      %739 = vst [vmem:[#allocation2 + $0xb8] sm:$0xff] %v707
      %740 = vst [vmem:[#allocation2 + $0xc0] sm:$0xff] %v708
      %741 = vst [vmem:[#allocation2 + $0xc8] sm:$0xff] %v709
      %742 = vst [vmem:[#allocation2 + $0xd0] sm:$0xff] %v710
      %743 = vst [vmem:[#allocation2 + $0xd8] sm:$0xff] %v711
      %744 = vst [vmem:[#allocation2 + $0xe0] sm:$0xff] %v712
      %745 = vst [vmem:[#allocation2 + $0xe8] sm:$0xff] %v713
      %746 = vst [vmem:[#allocation2 + $0xf0] sm:$0xff] %v714
      %747 = vst [vmem:[#allocation2 + $0xf8] sm:$0xff] %v715
      // Predicated region
      $region37: #{double_conv.2} parent=31 // pred_check
        %p748 = pneg %p263
      $region38: #{double_conv.2} parent=31 // pred_check_branch
        %750 = sbr.rel (%p748) target = $region40
      $region39: #{double_conv.2} parent=31 // pred_region
        %v751 = vld [vmem:[%s252] sm:$0x1]
        %v752 = vld [vmem:[%s252 + $0x1] sm:$0x1]
        %v753 = vld [vmem:[#allocation2] sm:$0xff]
        %v754 = vld [vmem:[#allocation2 + $0x8] sm:$0xff]
        %v755 = vld [vmem:[#allocation2 + $0x10] sm:$0xff]
        %v756 = vld [vmem:[#allocation2 + $0x18] sm:$0xff]
        %v757 = vld [vmem:[#allocation2 + $0x20] sm:$0xff]
        %v758 = vld [vmem:[#allocation2 + $0x28] sm:$0xff]
        %v759 = vld [vmem:[#allocation2 + $0x30] sm:$0xff]
        %v760 = vld [vmem:[#allocation2 + $0x38] sm:$0xff]
        %v761 = vld [vmem:[#allocation2 + $0x40] sm:$0xff]
        %v762 = vld [vmem:[#allocation2 + $0x48] sm:$0xff]
        %v763 = vld [vmem:[#allocation2 + $0x50] sm:$0xff]
        %v764 = vld [vmem:[#allocation2 + $0x58] sm:$0xff]
        %v765 = vld [vmem:[#allocation2 + $0x60] sm:$0xff]
        %v766 = vld [vmem:[#allocation2 + $0x68] sm:$0xff]
        %v767 = vld [vmem:[#allocation2 + $0x70] sm:$0xff]
        %v768 = vld [vmem:[#allocation2 + $0x78] sm:$0xff]
        %v769 = vld [vmem:[#allocation2 + $0x80] sm:$0xff]
        %v770 = vld [vmem:[#allocation2 + $0x88] sm:$0xff]
        %v771 = vld [vmem:[#allocation2 + $0x90] sm:$0xff]
        %v772 = vld [vmem:[#allocation2 + $0x98] sm:$0xff]
        %v773 = vld [vmem:[#allocation2 + $0xa0] sm:$0xff]
        %v774 = vld [vmem:[#allocation2 + $0xa8] sm:$0xff]
        %v775 = vld [vmem:[#allocation2 + $0xb0] sm:$0xff]
        %v776 = vld [vmem:[#allocation2 + $0xb8] sm:$0xff]
        %v777 = vld [vmem:[#allocation2 + $0xc0] sm:$0xff]
        %v778 = vld [vmem:[#allocation2 + $0xc8] sm:$0xff]
        %v779 = vld [vmem:[#allocation2 + $0xd0] sm:$0xff]
        %v780 = vld [vmem:[#allocation2 + $0xd8] sm:$0xff]
        %v781 = vld [vmem:[#allocation2 + $0xe0] sm:$0xff]
        %v782 = vld [vmem:[#allocation2 + $0xe8] sm:$0xff]
        %v783 = vld [vmem:[#allocation2 + $0xf0] sm:$0xff]
        %v784 = vld [vmem:[#allocation2 + $0xf8] sm:$0xff]
        %v785 = vlaneseq
        %v786 = vshrl.u32 %v785, 7
        %v787 = vsub.s32 0, %v786
        %v788 = vrot.slane %v751, %v787
        %v789 = vmul.f32 %v753, %v788
        %v790 = vmul.f32 %v754, %v788
        %v791 = vmul.f32 %v755, %v788
        %v792 = vmul.f32 %v756, %v788
        %v793 = vmul.f32 %v757, %v788
        %v794 = vmul.f32 %v758, %v788
        %v795 = vmul.f32 %v759, %v788
        %v796 = vmul.f32 %v760, %v788
        %v797 = vmul.f32 %v761, %v788
        %v798 = vmul.f32 %v762, %v788
        %v799 = vmul.f32 %v763, %v788
        %v800 = vmul.f32 %v764, %v788
        %v801 = vmul.f32 %v765, %v788
        %v802 = vmul.f32 %v766, %v788
        %v803 = vmul.f32 %v767, %v788
        %v804 = vmul.f32 %v768, %v788
        %v805 = vmul.f32 %v769, %v788
        %v806 = vmul.f32 %v770, %v788
        %v807 = vmul.f32 %v771, %v788
        %v808 = vmul.f32 %v772, %v788
        %v809 = vmul.f32 %v773, %v788
        %v810 = vmul.f32 %v774, %v788
        %v811 = vmul.f32 %v775, %v788
        %v812 = vmul.f32 %v776, %v788
        %v813 = vmul.f32 %v777, %v788
        %v814 = vmul.f32 %v778, %v788
        %v815 = vmul.f32 %v779, %v788
        %v816 = vmul.f32 %v780, %v788
        %v817 = vmul.f32 %v781, %v788
        %v818 = vmul.f32 %v782, %v788
        %v819 = vmul.f32 %v783, %v788
        %v820 = vmul.f32 %v784, %v788
        %v821 = vlaneseq
        %v822 = vshrl.u32 %v821, 7
        %v823 = vsub.s32 0, %v822
        %v824 = vrot.slane %v752, %v823
        %v825 = vadd.f32 %v789, %v824
        %v826 = vadd.f32 %v790, %v824
        %v827 = vadd.f32 %v791, %v824
        %v828 = vadd.f32 %v792, %v824
        %v829 = vadd.f32 %v793, %v824
        %v830 = vadd.f32 %v794, %v824
        %v831 = vadd.f32 %v795, %v824
        %v832 = vadd.f32 %v796, %v824
        %v833 = vadd.f32 %v797, %v824
        %v834 = vadd.f32 %v798, %v824
        %v835 = vadd.f32 %v799, %v824
        %v836 = vadd.f32 %v800, %v824
        %v837 = vadd.f32 %v801, %v824
        %v838 = vadd.f32 %v802, %v824
        %v839 = vadd.f32 %v803, %v824
        %v840 = vadd.f32 %v804, %v824
        %v841 = vadd.f32 %v805, %v824
        %v842 = vadd.f32 %v806, %v824
        %v843 = vadd.f32 %v807, %v824
        %v844 = vadd.f32 %v808, %v824
        %v845 = vadd.f32 %v809, %v824
        %v846 = vadd.f32 %v810, %v824
        %v847 = vadd.f32 %v811, %v824
        %v848 = vadd.f32 %v812, %v824
        %v849 = vadd.f32 %v813, %v824
        %v850 = vadd.f32 %v814, %v824
        %v851 = vadd.f32 %v815, %v824
        %v852 = vadd.f32 %v816, %v824
        %v853 = vadd.f32 %v817, %v824
        %v854 = vadd.f32 %v818, %v824
        %v855 = vadd.f32 %v819, %v824
        %v856 = vadd.f32 %v820, %v824
        %v857 = vmax.f32 %v825, 0.0
        %v858 = vmax.f32 %v826, 0.0
        %v859 = vmax.f32 %v827, 0.0
        %v860 = vmax.f32 %v828, 0.0
        %v861 = vmax.f32 %v829, 0.0
        %v862 = vmax.f32 %v830, 0.0
        %v863 = vmax.f32 %v831, 0.0
        %v864 = vmax.f32 %v832, 0.0
        %v865 = vmax.f32 %v833, 0.0
        %v866 = vmax.f32 %v834, 0.0
        %v867 = vmax.f32 %v835, 0.0
        %v868 = vmax.f32 %v836, 0.0
        %v869 = vmax.f32 %v837, 0.0
        %v870 = vmax.f32 %v838, 0.0
        %v871 = vmax.f32 %v839, 0.0
        %v872 = vmax.f32 %v840, 0.0
        %v873 = vmax.f32 %v841, 0.0
        %v874 = vmax.f32 %v842, 0.0
        %v875 = vmax.f32 %v843, 0.0
        %v876 = vmax.f32 %v844, 0.0
        %v877 = vmax.f32 %v845, 0.0
        %v878 = vmax.f32 %v846, 0.0
        %v879 = vmax.f32 %v847, 0.0
        %v880 = vmax.f32 %v848, 0.0
        %v881 = vmax.f32 %v849, 0.0
        %v882 = vmax.f32 %v850, 0.0
        %v883 = vmax.f32 %v851, 0.0
        %v884 = vmax.f32 %v852, 0.0
        %v885 = vmax.f32 %v853, 0.0
        %v886 = vmax.f32 %v854, 0.0
        %v887 = vmax.f32 %v855, 0.0
        %v888 = vmax.f32 %v856, 0.0
        %v889 = vpack.c.bf16 %v858, %v857
        %v890 = vpack.c.bf16 %v860, %v859
        %v891 = vpack.c.bf16 %v862, %v861
        %v892 = vpack.c.bf16 %v864, %v863
        %v893 = vpack.c.bf16 %v866, %v865
        %v894 = vpack.c.bf16 %v868, %v867
        %v895 = vpack.c.bf16 %v870, %v869
        %v896 = vpack.c.bf16 %v872, %v871
        %v897 = vpack.c.bf16 %v874, %v873
        %v898 = vpack.c.bf16 %v876, %v875
        %v899 = vpack.c.bf16 %v878, %v877
        %v900 = vpack.c.bf16 %v880, %v879
        %v901 = vpack.c.bf16 %v882, %v881
        %v902 = vpack.c.bf16 %v884, %v883
        %v903 = vpack.c.bf16 %v886, %v885
        %v904 = vpack.c.bf16 %v888, %v887
        %v921 = vunpack.c.l.b16 %v889
        %v922 = vunpack.c.h.b16 %v889
        %v923 = vunpack.c.l.b16 %v890
        %v924 = vunpack.c.h.b16 %v890
        %v925 = vunpack.c.l.b16 %v891
        %v926 = vunpack.c.h.b16 %v891
        %v927 = vunpack.c.l.b16 %v892
        %v928 = vunpack.c.h.b16 %v892
        %v929 = vunpack.c.l.b16 %v893
        %v930 = vunpack.c.h.b16 %v893
        %v931 = vunpack.c.l.b16 %v894
        %v932 = vunpack.c.h.b16 %v894
        %v933 = vunpack.c.l.b16 %v895
        %v934 = vunpack.c.h.b16 %v895
        %v935 = vunpack.c.l.b16 %v896
        %v936 = vunpack.c.h.b16 %v896
        %v937 = vunpack.c.l.b16 %v897
        %v938 = vunpack.c.h.b16 %v897
        %v939 = vunpack.c.l.b16 %v898
        %v940 = vunpack.c.h.b16 %v898
        %v941 = vunpack.c.l.b16 %v899
        %v942 = vunpack.c.h.b16 %v899
        %v943 = vunpack.c.l.b16 %v900
        %v944 = vunpack.c.h.b16 %v900
        %v945 = vunpack.c.l.b16 %v901
        %v946 = vunpack.c.h.b16 %v901
        %v947 = vunpack.c.l.b16 %v902
        %v948 = vunpack.c.h.b16 %v902
        %v949 = vunpack.c.l.b16 %v903
        %v950 = vunpack.c.h.b16 %v903
        %v951 = vunpack.c.l.b16 %v904
        %v952 = vunpack.c.h.b16 %v904
        %v953 = vpack.c.b16 %v921, %v921
        %v954 = vpack.c.b16 %v922, %v922
        %v955 = vpack.c.b16 %v923, %v923
        %v956 = vpack.c.b16 %v924, %v924
        %v957 = vpack.c.b16 %v925, %v925
        %v958 = vpack.c.b16 %v926, %v926
        %v959 = vpack.c.b16 %v927, %v927
        %v960 = vpack.c.b16 %v928, %v928
        %v961 = vpack.c.b16 %v929, %v929
        %v962 = vpack.c.b16 %v930, %v930
        %v963 = vpack.c.b16 %v931, %v931
        %v964 = vpack.c.b16 %v932, %v932
        %v965 = vpack.c.b16 %v933, %v933
        %v966 = vpack.c.b16 %v934, %v934
        %v967 = vpack.c.b16 %v935, %v935
        %v968 = vpack.c.b16 %v936, %v936
        %v969 = vpack.c.b16 %v937, %v937
        %v970 = vpack.c.b16 %v938, %v938
        %v971 = vpack.c.b16 %v939, %v939
        %v972 = vpack.c.b16 %v940, %v940
        %v973 = vpack.c.b16 %v941, %v941
        %v974 = vpack.c.b16 %v942, %v942
        %v975 = vpack.c.b16 %v943, %v943
        %v976 = vpack.c.b16 %v944, %v944
        %v977 = vpack.c.b16 %v945, %v945
        %v978 = vpack.c.b16 %v946, %v946
        %v979 = vpack.c.b16 %v947, %v947
        %v980 = vpack.c.b16 %v948, %v948
        %v981 = vpack.c.b16 %v949, %v949
        %v982 = vpack.c.b16 %v950, %v950
        %v983 = vpack.c.b16 %v951, %v951
        %v984 = vpack.c.b16 %v952, %v952
        %1017 = vst [vmem:[%s260] sm:$0xf] %v953
        %1018 = vst [vmem:[%s260 + $0x4] sm:$0xf] %v954
        %1019 = vst [vmem:[%s260 + $0x8] sm:$0xf] %v955
        %1020 = vst [vmem:[%s260 + $0xc] sm:$0xf] %v956
        %1021 = vst [vmem:[%s260 + $0x10] sm:$0xf] %v957
        %1022 = vst [vmem:[%s260 + $0x14] sm:$0xf] %v958
        %1023 = vst [vmem:[%s260 + $0x18] sm:$0xf] %v959
        %1024 = vst [vmem:[%s260 + $0x1c] sm:$0xf] %v960
        %1025 = vst [vmem:[%s260 + $0x20] sm:$0xf] %v961
        %1026 = vst [vmem:[%s260 + $0x24] sm:$0xf] %v962
        %1027 = vst [vmem:[%s260 + $0x28] sm:$0xf] %v963
        %1028 = vst [vmem:[%s260 + $0x2c] sm:$0xf] %v964
        %1029 = vst [vmem:[%s260 + $0x30] sm:$0xf] %v965
        %1030 = vst [vmem:[%s260 + $0x34] sm:$0xf] %v966
        %1031 = vst [vmem:[%s260 + $0x38] sm:$0xf] %v967
        %1032 = vst [vmem:[%s260 + $0x3c] sm:$0xf] %v968
        %1033 = vst [vmem:[%s260 + $0x40] sm:$0xf] %v969
        %1034 = vst [vmem:[%s260 + $0x44] sm:$0xf] %v970
        %1035 = vst [vmem:[%s260 + $0x48] sm:$0xf] %v971
        %1036 = vst [vmem:[%s260 + $0x4c] sm:$0xf] %v972
        %1037 = vst [vmem:[%s260 + $0x50] sm:$0xf] %v973
        %1038 = vst [vmem:[%s260 + $0x54] sm:$0xf] %v974
        %1039 = vst [vmem:[%s260 + $0x58] sm:$0xf] %v975
        %1040 = vst [vmem:[%s260 + $0x5c] sm:$0xf] %v976
        %1041 = vst [vmem:[%s260 + $0x60] sm:$0xf] %v977
        %1042 = vst [vmem:[%s260 + $0x64] sm:$0xf] %v978
        %1043 = vst [vmem:[%s260 + $0x68] sm:$0xf] %v979
        %1044 = vst [vmem:[%s260 + $0x6c] sm:$0xf] %v980
        %1045 = vst [vmem:[%s260 + $0x70] sm:$0xf] %v981
        %1046 = vst [vmem:[%s260 + $0x74] sm:$0xf] %v982
        %1047 = vst [vmem:[%s260 + $0x78] sm:$0xf] %v983
        %1048 = vst [vmem:[%s260 + $0x7c] sm:$0xf] %v984
      $region40: #{double_conv.2} parent=31 // pred_fallthru
        _
      %s1049 = smul.u32 32, %s19
      %p1050 = scmp.lt.s32.totalorder %s1049, 63
      %s1051 = scalar_select %p1050, %s1049, 63
      %p1052 = scmp.lt.s32.totalorder %s20, 0
      %s1053 = scalar_select %p1052, %s20, 0
      %s1054 = sadd.s32 %s1053, %s1051
      %s1055 = smul.addr %s1054, 4
      %s1056 = scalar_lea.vmem %s3, %s1055
      // Predicated region
      $region41: #{double_conv.2} parent=31 // pred_check
        %p1057 = pneg %p135
      $region42: #{double_conv.2} parent=31 // pred_check_branch
        %1059 = sbr.rel (%p1057) target = $region44
      $region43: #{double_conv.2} parent=31 // pred_region
        %s1060 = smul.u32 32, %s19
      $region44: #{double_conv.2} parent=31 // pred_fallthru
        _
    $region32: #{double_conv.2} parent=5 // pred_fallthru
      _
    %p1061 = scmp.le.s32.totalorder 2, %s9
    // Predicated region
    $region45: #{double_conv.2} parent=5 // pred_check
      %p1062 = pneg %p1061
    $region46: #{double_conv.2} parent=5 // pred_check_branch
      %1064 = sbr.rel (%p1062) target = $region48
    $region47: #{double_conv.2} parent=5 // pred_region
      %s1065 = ssub.s32 %s9, 2
      // Predicated region
      $region49: #{double_conv.2} parent=47 // pred_check
        %p1066 = pneg %p141
      $region50: #{double_conv.2} parent=47 // pred_check_branch
        %1068 = sbr.rel (%p1066) target = $region52
      $region51: #{double_conv.2} parent=47 // pred_region
        %s1069 = smul.u32 32, %s22
        %p1070 = scmp.lt.s32.totalorder %s1069, 63
        %s1071 = scalar_select %p1070, %s1069, 63
        %p1072 = scmp.lt.s32.totalorder %s23, 0
        %s1073 = scalar_select %p1072, %s23, 0
        %s1074 = sadd.s32 %s1073, %s1071
        %s1075 = smul.addr %s1074, 4
        %s1076 = scalar_lea.vmem %s3, %s1075
      $region52: #{double_conv.2} parent=47 // pred_fallthru
        _
    $region48: #{double_conv.2} parent=5 // pred_fallthru
      _
  $region6: #{double_conv.2} parent=0 // loop_footer
    %s13 = sadd.s32 1, %s9
  $region7: #{double_conv.2} parent=0 // loop_footer_branch
    %8 = sbr.rel target = $region3
  $region8: #{double_conv.2} parent=0 // loop_exit
    _

// kernel: double_conv.3
$region0: #{double_conv.3}
  #allocation0 [shape = 'u32[]', space=smem, size = 0x4, offset = 0x4, fixed_abs, tag = 'smem constant byte address 0x4 - core index']
  #allocation1 [shape = 'u32[144,128]{1,0:T(1,128)}', space=vmem, size = 0x12000, scoped, tag = 'internal scratch']
  #allocation2 [shape = 'f32[256,128]{1,0:T(8,128)}', space=vmem, size = 0x20000, scoped, tag = 'scratch operand']
  %s0 = inlined_call_operand.vmem [shape: bf16[512,128], index: 0, kind: input, shape index: {}]
  %s1 = inlined_call_operand.vmem [shape: bf16[128,128], index: 1, kind: input, shape index: {}]
  %s2 = inlined_call_operand.vmem [shape: f32[2,128], index: 2, kind: input, shape index: {}]
  %s3 = inlined_call_operand.vmem [shape: f32[512,128], index: 3, kind: output, shape index: {}]
  %s4 = sld [smem:[#allocation0]]
  $region53: #{double_conv.3} parent=0
    _
  %s6 = ssub.s32 1, %s4
  %s7 = scalar_select 0, %s6, %s4
  loop: start=0, step=1, limit=4
  $region2: #{double_conv.3} parent=0 // loop_pre_header
    _
  $region3: #{double_conv.3} parent=0 // loop_header
    %s9 = sphi 0, %s13
    %p10 = scmp.ge.s32.totalorder %s9, 4
    %s16 = sphi 0, %s35
    %s17 = sphi 0, %s31
    %s18 = sphi 0, %s27
    %s19 = sphi 0, %s16
    %s20 = sphi 0, %s17
    %s21 = sphi 0, %s18
    %s22 = sphi 0, %s19
    %s23 = sphi 0, %s20
    %s24 = sphi 0, %s21
    %s40 = sphi 0, %s42
    %s43 = sphi 0, %s40
    %s44 = sphi 0, %s43
    %s60 = sphi 0, %s44
    %s68 = sphi 0, %s70
    %s71 = sphi 0, %s68
    %s72 = sphi 0, %s71
    %s88 = sphi 0, %s72
    %s94 = sphi 0, %s96
    %s97 = sphi 0, %s94
    %s98 = sphi 0, %s97
    %s114 = sphi 0, %s98
    %s122 = sphi 0, %s124
    %s125 = sphi 0, %s122
    %s126 = sphi 0, %s125
    %s142 = sphi 0, %s126
  $region4: #{double_conv.3} parent=0 // loop_header_branch
    %12 = sbr.rel (%p10) target = $region8
  $region5: #{double_conv.3} parent=0 // loop_body
    %s14 = ssub.s32 %s9, 1
    %s15 = ssub.s32 %s9, 2
    %s25 = sadd.s32 1, %s18
    %p26 = scmp.ge.s32.totalorder %s25, 1
    %s27 = scalar_select %p26, 0, %s25
    %s28 = sadd.s32 1, %s17
    %s29 = scalar_select %p26, %s28, %s17
    %p30 = scmp.ge.s32.totalorder %s29, 1
    %s31 = scalar_select %p30, 0, %s29
    %s32 = sadd.s32 1, %s16
    %s33 = scalar_select %p30, %s32, %s16
    %p34 = scmp.ge.s32.totalorder %s33, 2
    %s35 = scalar_select %p34, 0, %s33
    %s36 = ssub.s32 %s16, %s35
    %s37 = ssub.s32 %s18, %s27
    %s38 = sor.u32 %s36, %s37
    %p39 = scmp.eq.s32.totalorder %s38, 0
    %s41 = sadd.s32 %s40, 1
    %s42 = scalar_select %p39, %s40, %s41
    %p45 = pneg %p39
    %p46 = scmp.eq.s32.totalorder %s9, 1
    %p47 = por %p45, %p46
    %p48 = scmp.ne.s32.totalorder %s40, %s43
    %p49 = scmp.eq.s32.totalorder %s9, 0
    %p50 = por %p48, %p49
    %p51 = scmp.ne.s32.totalorder %s40, %s43
    %p52 = scmp.eq.s32.totalorder %s14, 1
    %p53 = por %p51, %p52
    %p54 = scmp.ne.s32.totalorder %s43, %s44
    %p55 = scmp.eq.s32.totalorder %s14, 0
    %p56 = por %p54, %p55
    %p57 = scmp.ne.s32.totalorder %s43, %s44
    %p58 = scmp.eq.s32.totalorder %s15, 1
    %p59 = por %p57, %p58
    %p61 = scmp.ne.s32.totalorder %s44, %s60
    %p62 = scmp.eq.s32.totalorder %s15, 0
    %p63 = por %p61, %p62
    %s64 = ssub.s32 %s18, %s27
    %s65 = ssub.s32 %s17, %s31
    %s66 = sor.u32 %s64, %s65
    %p67 = scmp.eq.s32.totalorder %s66, 0
    %s69 = sadd.s32 %s68, 1
    %s70 = scalar_select %p67, %s68, %s69
    %p73 = pneg %p67
    %p74 = scmp.eq.s32.totalorder %s9, 1
    %p75 = por %p73, %p74
    %p76 = scmp.ne.s32.totalorder %s68, %s71
    %p77 = scmp.eq.s32.totalorder %s9, 0
    %p78 = por %p76, %p77
    %p79 = scmp.ne.s32.totalorder %s68, %s71
    %p80 = scmp.eq.s32.totalorder %s14, 1
    %p81 = por %p79, %p80
    %p82 = scmp.ne.s32.totalorder %s71, %s72
    %p83 = scmp.eq.s32.totalorder %s14, 0
    %p84 = por %p82, %p83
    %p85 = scmp.ne.s32.totalorder %s71, %s72
    %p86 = scmp.eq.s32.totalorder %s15, 1
    %p87 = por %p85, %p86
    %p89 = scmp.ne.s32.totalorder %s72, %s88
    %p90 = scmp.eq.s32.totalorder %s15, 0
    %p91 = por %p89, %p90
    %s92 = ssub.s32 %s17, %s31
    %p93 = scmp.eq.s32.totalorder %s92, 0
    %s95 = sadd.s32 %s94, 1
    %s96 = scalar_select %p93, %s94, %s95
    %p99 = pneg %p93
    %p100 = scmp.eq.s32.totalorder %s9, 1
    %p101 = por %p99, %p100
    %p102 = scmp.ne.s32.totalorder %s94, %s97
    %p103 = scmp.eq.s32.totalorder %s9, 0
    %p104 = por %p102, %p103
    %p105 = scmp.ne.s32.totalorder %s94, %s97
    %p106 = scmp.eq.s32.totalorder %s14, 1
    %p107 = por %p105, %p106
    %p108 = scmp.ne.s32.totalorder %s97, %s98
    %p109 = scmp.eq.s32.totalorder %s14, 0
    %p110 = por %p108, %p109
    %p111 = scmp.ne.s32.totalorder %s97, %s98
    %p112 = scmp.eq.s32.totalorder %s15, 1
    %p113 = por %p111, %p112
    %p115 = scmp.ne.s32.totalorder %s98, %s114
    %p116 = scmp.eq.s32.totalorder %s15, 0
    %p117 = por %p115, %p116
    %s118 = ssub.s32 %s16, %s35
    %s119 = ssub.s32 %s17, %s31
    %s120 = sor.u32 %s118, %s119
    %p121 = scmp.eq.s32.totalorder %s120, 0
    %s123 = sadd.s32 %s122, 1
    %s124 = scalar_select %p121, %s122, %s123
    %p127 = pneg %p121
    %p128 = scmp.eq.s32.totalorder %s9, 1
    %p129 = por %p127, %p128
    %p130 = scmp.ne.s32.totalorder %s122, %s125
    %p131 = scmp.eq.s32.totalorder %s9, 0
    %p132 = por %p130, %p131
    %p133 = scmp.ne.s32.totalorder %s122, %s125
    %p134 = scmp.eq.s32.totalorder %s14, 1
    %p135 = por %p133, %p134
    %p136 = scmp.ne.s32.totalorder %s125, %s126
    %p137 = scmp.eq.s32.totalorder %s14, 0
    %p138 = por %p136, %p137
    %p139 = scmp.ne.s32.totalorder %s125, %s126
    %p140 = scmp.eq.s32.totalorder %s15, 1
    %p141 = por %p139, %p140
    %p143 = scmp.ne.s32.totalorder %s126, %s142
    %p144 = scmp.eq.s32.totalorder %s15, 0
    %p145 = por %p143, %p144
    %p146 = scmp.le.s32.totalorder 1, %s9
    %p147 = scmp.lt.s32.totalorder %s9, 3
    %p148 = pnand %p146, %p147
    %p149 = pneg %p148
    // Predicated region
    $region9: #{double_conv.3} parent=5 // pred_check
      _
    $region10: #{double_conv.3} parent=5 // pred_check_branch
      %151 = sbr.rel (%p148) target = $region12
    $region11: #{double_conv.3} parent=5 // pred_region
      %s152 = ssub.s32 %s9, 1
      // Predicated region
      $region13: #{double_conv.3} parent=11 // pred_check
        %p153 = pneg %p84
      $region14: #{double_conv.3} parent=11 // pred_check_branch
        %155 = sbr.rel (%p153) target = $region16
      $region15: #{double_conv.3} parent=11 // pred_region
        %s156 = smul.u32 16, %s21
        %p157 = scmp.lt.s32.totalorder %s156, 15
        %s158 = scalar_select %p157, %s156, 15
        %p159 = scmp.lt.s32.totalorder %s20, 0
        %s160 = scalar_select %p159, %s20, 0
        %s161 = sadd.s32 %s160, %s158
        %s162 = smul.addr %s161, 4
        %s163 = scalar_lea.vmem %s1, %s162
        %s164 = smul.u32 16, %s21
      $region16: #{double_conv.3} parent=11 // pred_fallthru
        _
      // Predicated region
      $region17: #{double_conv.3} parent=11 // pred_check
        %p165 = pneg %p110
      $region18: #{double_conv.3} parent=11 // pred_check_branch
        %167 = sbr.rel (%p165) target = $region20
      $region19: #{double_conv.3} parent=11 // pred_region
        %p168 = scmp.lt.s32.totalorder %s20, 0
        %s169 = scalar_select %p168, %s20, 0
        %s170 = smul.addr %s169, 2
        %s171 = scalar_lea.vmem %s2, %s170
      $region20: #{double_conv.3} parent=11 // pred_fallthru
        _
    $region12: #{double_conv.3} parent=5 // pred_fallthru
      _
    %p172 = scmp.lt.s32.totalorder %s9, 2
    // Predicated region
    $region21: #{double_conv.3} parent=5 // pred_check
      %p173 = pneg %p172
    $region22: #{double_conv.3} parent=5 // pred_check_branch
      %175 = sbr.rel (%p173) target = $region24
    $region23: #{double_conv.3} parent=5 // pred_region
      // Predicated region
      $region25: #{double_conv.3} parent=23 // pred_check
        %p176 = pneg %p50
      $region26: #{double_conv.3} parent=23 // pred_check_branch
        %178 = sbr.rel (%p176) target = $region28
      $region27: #{double_conv.3} parent=23 // pred_region
        %s179 = smul.u32 32, %s16
        %p180 = scmp.lt.s32.totalorder %s179, 63
        %s181 = scalar_select %p180, %s179, 63
        %p182 = scmp.lt.s32.totalorder %s18, 0
        %s183 = scalar_select %p182, %s18, 0
        %s184 = sadd.s32 %s183, %s181
        %s185 = smul.addr %s184, 4
        %s186 = scalar_lea.vmem %s0, %s185
        %s187 = smul.u32 32, %s16
      $region28: #{double_conv.3} parent=23 // pred_fallthru
        _
    $region24: #{double_conv.3} parent=5 // pred_fallthru
      _
    %p188 = scmp.le.s32.totalorder 1, %s9
    %p189 = scmp.lt.s32.totalorder %s9, 3
    %p190 = pnand %p188, %p189
    %p191 = pneg %p190
    // Predicated region
    $region29: #{double_conv.3} parent=5 // pred_check
      _
    $region30: #{double_conv.3} parent=5 // pred_check_branch
      %193 = sbr.rel (%p190) target = $region32
    $region31: #{double_conv.3} parent=5 // pred_region
      %s194 = ssub.s32 %s9, 1
      %s195 = smul.u32 32, %s19
      %p196 = scmp.lt.s32.totalorder %s195, 63
      %s197 = scalar_select %p196, %s195, 63
      %p198 = scmp.lt.s32.totalorder %s21, 0
      %s199 = scalar_select %p198, %s21, 0
      %s200 = sadd.s32 %s199, %s197
      %s201 = smul.addr %s200, 4
      %s202 = scalar_lea.vmem %s0, %s201
      %p203 = pneg %p56
      %p204 = pneg %p53
      %s205 = smul.u32 16, %s21
      %p206 = scmp.lt.s32.totalorder %s205, 15
      %s207 = scalar_select %p206, %s205, 15
      %p208 = scmp.lt.s32.totalorder %s20, 0
      %s209 = scalar_select %p208, %s20, 0
      %s210 = sadd.s32 %s209, %s207
      %s211 = smul.addr %s210, 4
      %s212 = scalar_lea.vmem %s1, %s211
      %p213 = pneg %p84
      %p214 = pneg %p81
      %p215 = scmp.lt.s32.totalorder %s20, 0
      %s216 = scalar_select %p215, %s20, 0
      %s217 = smul.addr %s216, 2
      %s218 = scalar_lea.vmem %s2, %s217
      %p219 = pneg %p110
      %p220 = pneg %p107
      %p221 = pneg %p138
      %p222 = pneg %p135
      %s223 = smul.u32 32, %s19
      %p224 = scmp.lt.s32.totalorder %s223, 63
      %s225 = scalar_select %p224, %s223, 63
      %p226 = scmp.lt.s32.totalorder %s20, 0
      %s227 = scalar_select %p226, %s20, 0
      %s228 = sadd.s32 %s227, %s225
      %s229 = smul.addr %s228, 8
      %s230 = scalar_lea.vmem %s3, %s229
      %s231 = smul.u32 32, %s19
      %p232 = scmp.lt.s32.totalorder %s231, 63
      %s233 = scalar_select %p232, %s231, 63
      %p234 = scmp.lt.s32.totalorder %s21, 0
      %s235 = scalar_select %p234, %s21, 0
      %s236 = sadd.s32 %s235, %s233
      %s237 = smul.addr %s236, 4
      %s238 = scalar_lea.vmem %s0, %s237
      %s239 = smul.u32 32, %s19
      %s240 = smul.u32 16, %s21
      %p241 = scmp.lt.s32.totalorder %s240, 15
      %s242 = scalar_select %p241, %s240, 15
      %p243 = scmp.lt.s32.totalorder %s20, 0
      %s244 = scalar_select %p243, %s20, 0
      %s245 = sadd.s32 %s244, %s242
      %s246 = smul.addr %s245, 4
      %s247 = scalar_lea.vmem %s1, %s246
      %s248 = smul.u32 16, %s21
      %p249 = scmp.lt.s32.totalorder %s20, 0
      %s250 = scalar_select %p249, %s20, 0
      %s251 = smul.addr %s250, 2
      %s252 = scalar_lea.vmem %s2, %s251
      %s253 = smul.u32 32, %s19
      %p254 = scmp.lt.s32.totalorder %s253, 63
      %s255 = scalar_select %p254, %s253, 63
      %p256 = scmp.lt.s32.totalorder %s20, 0
      %s257 = scalar_select %p256, %s20, 0
      %s258 = sadd.s32 %s257, %s255
      %s259 = smul.addr %s258, 8
      %s260 = scalar_lea.vmem %s3, %s259
      %s261 = smul.u32 32, %s19
      %p263 = scmp.eq.s32.totalorder %s21, 0
      // Predicated region
      $region33: #{double_conv.3} parent=31 // pred_check
        %p264 = pneg %p263
      $region34: #{double_conv.3} parent=31 // pred_check_branch
        %266 = sbr.rel (%p264) target = $region36
      $region35: #{double_conv.3} parent=31 // pred_region
        %267 = vst [vmem:[#allocation2] sm:$0xff] 0.0
        %268 = vst [vmem:[#allocation2 + $0x8] sm:$0xff] 0.0
        %269 = vst [vmem:[#allocation2 + $0x10] sm:$0xff] 0.0
        %270 = vst [vmem:[#allocation2 + $0x18] sm:$0xff] 0.0
        %271 = vst [vmem:[#allocation2 + $0x20] sm:$0xff] 0.0
        %272 = vst [vmem:[#allocation2 + $0x28] sm:$0xff] 0.0
        %273 = vst [vmem:[#allocation2 + $0x30] sm:$0xff] 0.0
        %274 = vst [vmem:[#allocation2 + $0x38] sm:$0xff] 0.0
        %275 = vst [vmem:[#allocation2 + $0x40] sm:$0xff] 0.0
        %276 = vst [vmem:[#allocation2 + $0x48] sm:$0xff] 0.0
        %277 = vst [vmem:[#allocation2 + $0x50] sm:$0xff] 0.0
        %278 = vst [vmem:[#allocation2 + $0x58] sm:$0xff] 0.0
        %279 = vst [vmem:[#allocation2 + $0x60] sm:$0xff] 0.0
        %280 = vst [vmem:[#allocation2 + $0x68] sm:$0xff] 0.0
        %281 = vst [vmem:[#allocation2 + $0x70] sm:$0xff] 0.0
        %282 = vst [vmem:[#allocation2 + $0x78] sm:$0xff] 0.0
        %283 = vst [vmem:[#allocation2 + $0x80] sm:$0xff] 0.0
        %284 = vst [vmem:[#allocation2 + $0x88] sm:$0xff] 0.0
        %285 = vst [vmem:[#allocation2 + $0x90] sm:$0xff] 0.0
        %286 = vst [vmem:[#allocation2 + $0x98] sm:$0xff] 0.0
        %287 = vst [vmem:[#allocation2 + $0xa0] sm:$0xff] 0.0
        %288 = vst [vmem:[#allocation2 + $0xa8] sm:$0xff] 0.0
        %289 = vst [vmem:[#allocation2 + $0xb0] sm:$0xff] 0.0
        %290 = vst [vmem:[#allocation2 + $0xb8] sm:$0xff] 0.0
        %291 = vst [vmem:[#allocation2 + $0xc0] sm:$0xff] 0.0
        %292 = vst [vmem:[#allocation2 + $0xc8] sm:$0xff] 0.0
        %293 = vst [vmem:[#allocation2 + $0xd0] sm:$0xff] 0.0
        %294 = vst [vmem:[#allocation2 + $0xd8] sm:$0xff] 0.0
        %295 = vst [vmem:[#allocation2 + $0xe0] sm:$0xff] 0.0
        %296 = vst [vmem:[#allocation2 + $0xe8] sm:$0xff] 0.0
        %297 = vst [vmem:[#allocation2 + $0xf0] sm:$0xff] 0.0
        %298 = vst [vmem:[#allocation2 + $0xf8] sm:$0xff] 0.0
      $region36: #{double_conv.3} parent=31 // pred_fallthru
        _
      %v299 = vld [vmem:[#allocation2] sm:$0xff]
      %v300 = vld [vmem:[#allocation2 + $0x8] sm:$0xff]
      %v301 = vld [vmem:[#allocation2 + $0x10] sm:$0xff]
      %v302 = vld [vmem:[#allocation2 + $0x18] sm:$0xff]
      %v303 = vld [vmem:[#allocation2 + $0x20] sm:$0xff]
      %v304 = vld [vmem:[#allocation2 + $0x28] sm:$0xff]
      %v305 = vld [vmem:[#allocation2 + $0x30] sm:$0xff]
      %v306 = vld [vmem:[#allocation2 + $0x38] sm:$0xff]
      %v307 = vld [vmem:[#allocation2 + $0x40] sm:$0xff]
      %v308 = vld [vmem:[#allocation2 + $0x48] sm:$0xff]
      %v309 = vld [vmem:[#allocation2 + $0x50] sm:$0xff]
      %v310 = vld [vmem:[#allocation2 + $0x58] sm:$0xff]
      %v311 = vld [vmem:[#allocation2 + $0x60] sm:$0xff]
      %v312 = vld [vmem:[#allocation2 + $0x68] sm:$0xff]
      %v313 = vld [vmem:[#allocation2 + $0x70] sm:$0xff]
      %v314 = vld [vmem:[#allocation2 + $0x78] sm:$0xff]
      %v315 = vld [vmem:[#allocation2 + $0x80] sm:$0xff]
      %v316 = vld [vmem:[#allocation2 + $0x88] sm:$0xff]
      %v317 = vld [vmem:[#allocation2 + $0x90] sm:$0xff]
      %v318 = vld [vmem:[#allocation2 + $0x98] sm:$0xff]
      %v319 = vld [vmem:[#allocation2 + $0xa0] sm:$0xff]
      %v320 = vld [vmem:[#allocation2 + $0xa8] sm:$0xff]
      %v321 = vld [vmem:[#allocation2 + $0xb0] sm:$0xff]
      %v322 = vld [vmem:[#allocation2 + $0xb8] sm:$0xff]
      %v323 = vld [vmem:[#allocation2 + $0xc0] sm:$0xff]
      %v324 = vld [vmem:[#allocation2 + $0xc8] sm:$0xff]
      %v325 = vld [vmem:[#allocation2 + $0xd0] sm:$0xff]
      %v326 = vld [vmem:[#allocation2 + $0xd8] sm:$0xff]
      %v327 = vld [vmem:[#allocation2 + $0xe0] sm:$0xff]
      %v328 = vld [vmem:[#allocation2 + $0xe8] sm:$0xff]
      %v329 = vld [vmem:[#allocation2 + $0xf0] sm:$0xff]
      %v330 = vld [vmem:[#allocation2 + $0xf8] sm:$0xff]
      %v331 = vld [vmem:[%s238] sm:$0xf]
      %v332 = vld [vmem:[%s238 + $0x4] sm:$0xf]
      %v333 = vld [vmem:[%s238 + $0x8] sm:$0xf]
      %v334 = vld [vmem:[%s238 + $0xc] sm:$0xf]
      %v335 = vld [vmem:[%s238 + $0x10] sm:$0xf]
      %v336 = vld [vmem:[%s238 + $0x14] sm:$0xf]
      %v337 = vld [vmem:[%s238 + $0x18] sm:$0xf]
      %v338 = vld [vmem:[%s238 + $0x1c] sm:$0xf]
      %v339 = vld [vmem:[%s238 + $0x20] sm:$0xf]
      %v340 = vld [vmem:[%s238 + $0x24] sm:$0xf]
      %v341 = vld [vmem:[%s238 + $0x28] sm:$0xf]
      %v342 = vld [vmem:[%s238 + $0x2c] sm:$0xf]
      %v343 = vld [vmem:[%s238 + $0x30] sm:$0xf]
      %v344 = vld [vmem:[%s238 + $0x34] sm:$0xf]
      %v345 = vld [vmem:[%s238 + $0x38] sm:$0xf]
      %v346 = vld [vmem:[%s238 + $0x3c] sm:$0xf]
      %v347 = vld [vmem:[%s238 + $0x40] sm:$0xf]
      %v348 = vld [vmem:[%s238 + $0x44] sm:$0xf]
      %v349 = vld [vmem:[%s238 + $0x48] sm:$0xf]
      %v350 = vld [vmem:[%s238 + $0x4c] sm:$0xf]
      %v351 = vld [vmem:[%s238 + $0x50] sm:$0xf]
      %v352 = vld [vmem:[%s238 + $0x54] sm:$0xf]
      %v353 = vld [vmem:[%s238 + $0x58] sm:$0xf]
      %v354 = vld [vmem:[%s238 + $0x5c] sm:$0xf]
      %v355 = vld [vmem:[%s238 + $0x60] sm:$0xf]
      %v356 = vld [vmem:[%s238 + $0x64] sm:$0xf]
      %v357 = vld [vmem:[%s238 + $0x68] sm:$0xf]
      %v358 = vld [vmem:[%s238 + $0x6c] sm:$0xf]
      %v359 = vld [vmem:[%s238 + $0x70] sm:$0xf]
      %v360 = vld [vmem:[%s238 + $0x74] sm:$0xf]
      %v361 = vld [vmem:[%s238 + $0x78] sm:$0xf]
      %v362 = vld [vmem:[%s238 + $0x7c] sm:$0xf]
      %v363 = vld [vmem:[%s247] sm:$0xf]
      %v364 = vld [vmem:[%s247 + $0x4] sm:$0xf]
      %v365 = vld [vmem:[%s247 + $0x8] sm:$0xf]
      %v366 = vld [vmem:[%s247 + $0xc] sm:$0xf]
      %v367 = vld [vmem:[%s247 + $0x10] sm:$0xf]
      %v368 = vld [vmem:[%s247 + $0x14] sm:$0xf]
      %v369 = vld [vmem:[%s247 + $0x18] sm:$0xf]
      %v370 = vld [vmem:[%s247 + $0x1c] sm:$0xf]
      %v371 = vld [vmem:[%s247 + $0x20] sm:$0xf]
      %v372 = vld [vmem:[%s247 + $0x24] sm:$0xf]
      %v373 = vld [vmem:[%s247 + $0x28] sm:$0xf]
      %v374 = vld [vmem:[%s247 + $0x2c] sm:$0xf]
      %v375 = vld [vmem:[%s247 + $0x30] sm:$0xf]
      %v376 = vld [vmem:[%s247 + $0x34] sm:$0xf]
      %v377 = vld [vmem:[%s247 + $0x38] sm:$0xf]
      %v378 = vld [vmem:[%s247 + $0x3c] sm:$0xf]
      %v411 = vunpack.c.l.b16 %v331
      %v412 = vunpack.c.l.b16 %v332
      %v413 = vunpack.c.l.b16 %v333
      %v414 = vunpack.c.l.b16 %v334
      %v415 = vunpack.c.l.b16 %v335
      %v416 = vunpack.c.l.b16 %v336
      %v417 = vunpack.c.l.b16 %v337
      %v418 = vunpack.c.l.b16 %v338
      %v419 = vunpack.c.l.b16 %v339
      %v420 = vunpack.c.l.b16 %v340
      %v421 = vunpack.c.l.b16 %v341
      %v422 = vunpack.c.l.b16 %v342
      %v423 = vunpack.c.l.b16 %v343
      %v424 = vunpack.c.l.b16 %v344
      %v425 = vunpack.c.l.b16 %v345
      %v426 = vunpack.c.l.b16 %v346
      %v427 = vunpack.c.l.b16 %v347
      %v428 = vunpack.c.l.b16 %v348
      %v429 = vunpack.c.l.b16 %v349
      %v430 = vunpack.c.l.b16 %v350
      %v431 = vunpack.c.l.b16 %v351
      %v432 = vunpack.c.l.b16 %v352
      %v433 = vunpack.c.l.b16 %v353
      %v434 = vunpack.c.l.b16 %v354
      %v435 = vunpack.c.l.b16 %v355
      %v436 = vunpack.c.l.b16 %v356
      %v437 = vunpack.c.l.b16 %v357
      %v438 = vunpack.c.l.b16 %v358
      %v439 = vunpack.c.l.b16 %v359
      %v440 = vunpack.c.l.b16 %v360
      %v441 = vunpack.c.l.b16 %v361
      %v442 = vunpack.c.l.b16 %v362
      %v443 = vpack.c.b16 %v412, %v411
      %v444 = vpack.c.b16 %v414, %v413
      %v445 = vpack.c.b16 %v416, %v415
      %v446 = vpack.c.b16 %v418, %v417
      %v447 = vpack.c.b16 %v420, %v419
      %v448 = vpack.c.b16 %v422, %v421
      %v449 = vpack.c.b16 %v424, %v423
      %v450 = vpack.c.b16 %v426, %v425
      %v451 = vpack.c.b16 %v428, %v427
      %v452 = vpack.c.b16 %v430, %v429
      %v453 = vpack.c.b16 %v432, %v431
      %v454 = vpack.c.b16 %v434, %v433
      %v455 = vpack.c.b16 %v436, %v435
      %v456 = vpack.c.b16 %v438, %v437
      %v457 = vpack.c.b16 %v440, %v439
      %v458 = vpack.c.b16 %v442, %v441
      %v491 = vunpack.c.l.b16 %v363
      %v492 = vunpack.c.l.b16 %v364
      %v493 = vunpack.c.l.b16 %v365
      %v494 = vunpack.c.l.b16 %v366
      %v495 = vunpack.c.l.b16 %v367
      %v496 = vunpack.c.l.b16 %v368
      %v497 = vunpack.c.l.b16 %v369
      %v498 = vunpack.c.l.b16 %v370
      %v499 = vunpack.c.l.b16 %v371
      %v500 = vunpack.c.l.b16 %v372
      %v501 = vunpack.c.l.b16 %v373
      %v502 = vunpack.c.l.b16 %v374
      %v503 = vunpack.c.l.b16 %v375
      %v504 = vunpack.c.l.b16 %v376
      %v505 = vunpack.c.l.b16 %v377
      %v506 = vunpack.c.l.b16 %v378
      %v507 = vpack.c.b16 %v492, %v491
      %v508 = vpack.c.b16 %v494, %v493
      %v509 = vpack.c.b16 %v496, %v495
      %v510 = vpack.c.b16 %v498, %v497
      %v511 = vpack.c.b16 %v500, %v499
      %v512 = vpack.c.b16 %v502, %v501
      %v513 = vpack.c.b16 %v504, %v503
      %v514 = vpack.c.b16 %v506, %v505
      %523 = vmatprep.subr.bf16.mxu0 0
      %524 = vmatpush1.bf16.msra.mxu0 %v507
      %525 = vmatprep.subr.bf16.mxu0 0
      %526 = vmatpush1.bf16.msra.mxu0 %v508
      %527 = vmatprep.subr.bf16.mxu0 0
      %528 = vmatpush1.bf16.msra.mxu0 %v509
      %529 = vmatprep.subr.bf16.mxu0 0
      %530 = vmatpush1.bf16.msra.mxu0 %v510
      %531 = vmatprep.subr.bf16.mxu0 0
      %532 = vmatpush1.bf16.msra.mxu0 %v511
      %533 = vmatprep.subr.bf16.mxu0 0
      %534 = vmatpush1.bf16.msra.mxu0 %v512
      %535 = vmatprep.subr.bf16.mxu0 0
      %536 = vmatpush1.bf16.msra.mxu0 %v513
      %537 = vmatprep.subr.bf16.mxu0 0
      %538 = vmatpush1.bf16.msra.mxu0 %v514
      %539 = vmatprep.subr.bf16.mxu0 0
      %540 = vmatpush1.bf16.msra.mxu0 0
      %541 = vmatprep.subr.bf16.mxu0 0
      %542 = vmatpush1.bf16.msra.mxu0 0
      %543 = vmatprep.subr.bf16.mxu0 0
      %544 = vmatpush1.bf16.msra.mxu0 0
      %545 = vmatprep.subr.bf16.mxu0 0
      %546 = vmatpush1.bf16.msra.mxu0 0
      %547 = vmatprep.subr.bf16.mxu0 0
      %548 = vmatpush1.bf16.msra.mxu0 0
      %549 = vmatprep.subr.bf16.mxu0 0
      %550 = vmatpush1.bf16.msra.mxu0 0
      %551 = vmatprep.subr.bf16.mxu0 0
      %552 = vmatpush1.bf16.msra.mxu0 0
      %553 = vmatprep.subr.bf16.mxu0 0
      %554 = vmatpush1.bf16.msra.mxu0 0
      %555 = vmatprep.mubr.bf16.mxu0 0
      %556 = vmatmul.mubr.bf16.gmra.mrb[0].mxu0 %v443
      %v557 = vpop.f32.mrb[0].mxu0
      %v558 = vadd.f32 0.0, %v557
      %v559 = vpop.f32.mrb[0].mxu0
      %v560 = vpop.f32.mrb[0].mxu0
      %v561 = vadd.f32 0.0, %v560
      %v562 = vpop.f32.mrb[0].mxu0
      %563 = vmatprep.mubr.bf16.mxu0 0
      %564 = vmatmul.mubr.bf16.gmra.mrb[0].mxu0 %v444
      %v565 = vpop.f32.mrb[0].mxu0
      %v566 = vadd.f32 0.0, %v565
      %v567 = vpop.f32.mrb[0].mxu0
      %v568 = vpop.f32.mrb[0].mxu0
      %v569 = vadd.f32 0.0, %v568
      %v570 = vpop.f32.mrb[0].mxu0
      %571 = vmatprep.mubr.bf16.mxu0 0
      %572 = vmatmul.mubr.bf16.gmra.mrb[0].mxu0 %v445
      %v573 = vpop.f32.mrb[0].mxu0
      %v574 = vadd.f32 0.0, %v573
      %v575 = vpop.f32.mrb[0].mxu0
      %v576 = vpop.f32.mrb[0].mxu0
      %v577 = vadd.f32 0.0, %v576
      %v578 = vpop.f32.mrb[0].mxu0
      %579 = vmatprep.mubr.bf16.mxu0 0
      %580 = vmatmul.mubr.bf16.gmra.mrb[0].mxu0 %v446
      %v581 = vpop.f32.mrb[0].mxu0
      %v582 = vadd.f32 0.0, %v581
      %v583 = vpop.f32.mrb[0].mxu0
      %v584 = vpop.f32.mrb[0].mxu0
      %v585 = vadd.f32 0.0, %v584
      %v586 = vpop.f32.mrb[0].mxu0
      %587 = vmatprep.mubr.bf16.mxu0 0
      %588 = vmatmul.mubr.bf16.gmra.mrb[0].mxu0 %v447
      %v589 = vpop.f32.mrb[0].mxu0
      %v590 = vadd.f32 0.0, %v589
      %v591 = vpop.f32.mrb[0].mxu0
      %v592 = vpop.f32.mrb[0].mxu0
      %v593 = vadd.f32 0.0, %v592
      %v594 = vpop.f32.mrb[0].mxu0
      %595 = vmatprep.mubr.bf16.mxu0 0
      %596 = vmatmul.mubr.bf16.gmra.mrb[0].mxu0 %v448
      %v597 = vpop.f32.mrb[0].mxu0
      %v598 = vadd.f32 0.0, %v597
      %v599 = vpop.f32.mrb[0].mxu0
      %v600 = vpop.f32.mrb[0].mxu0
      %v601 = vadd.f32 0.0, %v600
      %v602 = vpop.f32.mrb[0].mxu0
      %603 = vmatprep.mubr.bf16.mxu0 0
      %604 = vmatmul.mubr.bf16.gmra.mrb[0].mxu0 %v449
      %v605 = vpop.f32.mrb[0].mxu0
      %v606 = vadd.f32 0.0, %v605
      %v607 = vpop.f32.mrb[0].mxu0
      %v608 = vpop.f32.mrb[0].mxu0
      %v609 = vadd.f32 0.0, %v608
      %v610 = vpop.f32.mrb[0].mxu0
      %611 = vmatprep.mubr.bf16.mxu0 0
      %612 = vmatmul.mubr.bf16.gmra.mrb[0].mxu0 %v450
      %v613 = vpop.f32.mrb[0].mxu0
      %v614 = vadd.f32 0.0, %v613
      %v615 = vpop.f32.mrb[0].mxu0
      %v616 = vpop.f32.mrb[0].mxu0
      %v617 = vadd.f32 0.0, %v616
      %v618 = vpop.f32.mrb[0].mxu0
      %619 = vmatprep.mubr.bf16.mxu0 0
      %620 = vmatmul.mubr.bf16.gmra.mrb[0].mxu0 %v451
      %v621 = vpop.f32.mrb[0].mxu0
      %v622 = vadd.f32 0.0, %v621
      %v623 = vpop.f32.mrb[0].mxu0
      %v624 = vpop.f32.mrb[0].mxu0
      %v625 = vadd.f32 0.0, %v624
      %v626 = vpop.f32.mrb[0].mxu0
      %627 = vmatprep.mubr.bf16.mxu0 0
      %628 = vmatmul.mubr.bf16.gmra.mrb[0].mxu0 %v452
      %v629 = vpop.f32.mrb[0].mxu0
      %v630 = vadd.f32 0.0, %v629
      %v631 = vpop.f32.mrb[0].mxu0
      %v632 = vpop.f32.mrb[0].mxu0
      %v633 = vadd.f32 0.0, %v632
      %v634 = vpop.f32.mrb[0].mxu0
      %635 = vmatprep.mubr.bf16.mxu0 0
      %636 = vmatmul.mubr.bf16.gmra.mrb[0].mxu0 %v453
      %v637 = vpop.f32.mrb[0].mxu0
      %v638 = vadd.f32 0.0, %v637
      %v639 = vpop.f32.mrb[0].mxu0
      %v640 = vpop.f32.mrb[0].mxu0
      %v641 = vadd.f32 0.0, %v640
      %v642 = vpop.f32.mrb[0].mxu0
      %643 = vmatprep.mubr.bf16.mxu0 0
      %644 = vmatmul.mubr.bf16.gmra.mrb[0].mxu0 %v454
      %v645 = vpop.f32.mrb[0].mxu0
      %v646 = vadd.f32 0.0, %v645
      %v647 = vpop.f32.mrb[0].mxu0
      %v648 = vpop.f32.mrb[0].mxu0
      %v649 = vadd.f32 0.0, %v648
      %v650 = vpop.f32.mrb[0].mxu0
      %651 = vmatprep.mubr.bf16.mxu0 0
      %652 = vmatmul.mubr.bf16.gmra.mrb[0].mxu0 %v455
      %v653 = vpop.f32.mrb[0].mxu0
      %v654 = vadd.f32 0.0, %v653
      %v655 = vpop.f32.mrb[0].mxu0
      %v656 = vpop.f32.mrb[0].mxu0
      %v657 = vadd.f32 0.0, %v656
      %v658 = vpop.f32.mrb[0].mxu0
      %659 = vmatprep.mubr.bf16.mxu0 0
      %660 = vmatmul.mubr.bf16.gmra.mrb[0].mxu0 %v456
      %v661 = vpop.f32.mrb[0].mxu0
      %v662 = vadd.f32 0.0, %v661
      %v663 = vpop.f32.mrb[0].mxu0
      %v664 = vpop.f32.mrb[0].mxu0
      %v665 = vadd.f32 0.0, %v664
      %v666 = vpop.f32.mrb[0].mxu0
      %667 = vmatprep.mubr.bf16.mxu0 0
      %668 = vmatmul.mubr.bf16.gmra.mrb[0].mxu0 %v457
      %v669 = vpop.f32.mrb[0].mxu0
      %v670 = vadd.f32 0.0, %v669
      %v671 = vpop.f32.mrb[0].mxu0
      %v672 = vpop.f32.mrb[0].mxu0
      %v673 = vadd.f32 0.0, %v672
      %v674 = vpop.f32.mrb[0].mxu0
      %675 = vmatprep.mubr.bf16.mxu0 0
      %676 = vmatmul.mubr.bf16.gmra.mrb[0].mxu0 %v458
      %v677 = vpop.f32.mrb[0].mxu0
      %v678 = vadd.f32 0.0, %v677
      %v679 = vpop.f32.mrb[0].mxu0
      %v680 = vpop.f32.mrb[0].mxu0
      %v681 = vadd.f32 0.0, %v680
      %v682 = vpop.f32.mrb[0].mxu0
      %683 = vdwg.mxu0
      %v684 = vadd.f32 %v299, %v558
      %v685 = vadd.f32 %v300, %v561
      %v686 = vadd.f32 %v301, %v566
      %v687 = vadd.f32 %v302, %v569
      %v688 = vadd.f32 %v303, %v574
      %v689 = vadd.f32 %v304, %v577
      %v690 = vadd.f32 %v305, %v582
      %v691 = vadd.f32 %v306, %v585
      %v692 = vadd.f32 %v307, %v590
      %v693 = vadd.f32 %v308, %v593
      %v694 = vadd.f32 %v309, %v598
      %v695 = vadd.f32 %v310, %v601
      %v696 = vadd.f32 %v311, %v606
      %v697 = vadd.f32 %v312, %v609
      %v698 = vadd.f32 %v313, %v614
      %v699 = vadd.f32 %v314, %v617
      %v700 = vadd.f32 %v315, %v622
      %v701 = vadd.f32 %v316, %v625
      %v702 = vadd.f32 %v317, %v630
      %v703 = vadd.f32 %v318, %v633
      %v704 = vadd.f32 %v319, %v638
      %v705 = vadd.f32 %v320, %v641
      %v706 = vadd.f32 %v321, %v646
      %v707 = vadd.f32 %v322, %v649
      %v708 = vadd.f32 %v323, %v654
      %v709 = vadd.f32 %v324, %v657
      %v710 = vadd.f32 %v325, %v662
      %v711 = vadd.f32 %v326, %v665
      %v712 = vadd.f32 %v327, %v670
      %v713 = vadd.f32 %v328, %v673
      %v714 = vadd.f32 %v329, %v678
      %v715 = vadd.f32 %v330, %v681
      %716 = vst [vmem:[#allocation2] sm:$0xff] %v684
      %717 = vst [vmem:[#allocation2 + $0x8] sm:$0xff] %v685
      %718 = vst [vmem:[#allocation2 + $0x10] sm:$0xff] %v686
      %719 = vst [vmem:[#allocation2 + $0x18] sm:$0xff] %v687
      %720 = vst [vmem:[#allocation2 + $0x20] sm:$0xff] %v688
      %721 = vst [vmem:[#allocation2 + $0x28] sm:$0xff] %v689
      %722 = vst [vmem:[#allocation2 + $0x30] sm:$0xff] %v690
      %723 = vst [vmem:[#allocation2 + $0x38] sm:$0xff] %v691
      %724 = vst [vmem:[#allocation2 + $0x40] sm:$0xff] %v692
      %725 = vst [vmem:[#allocation2 + $0x48] sm:$0xff] %v693
      %726 = vst [vmem:[#allocation2 + $0x50] sm:$0xff] %v694
      %727 = vst [vmem:[#allocation2 + $0x58] sm:$0xff] %v695
      %728 = vst [vmem:[#allocation2 + $0x60] sm:$0xff] %v696
      %729 = vst [vmem:[#allocation2 + $0x68] sm:$0xff] %v697
      %730 = vst [vmem:[#allocation2 + $0x70] sm:$0xff] %v698
      %731 = vst [vmem:[#allocation2 + $0x78] sm:$0xff] %v699
      %732 = vst [vmem:[#allocation2 + $0x80] sm:$0xff] %v700
      %733 = vst [vmem:[#allocation2 + $0x88] sm:$0xff] %v701
      %734 = vst [vmem:[#allocation2 + $0x90] sm:$0xff] %v702
      %735 = vst [vmem:[#allocation2 + $0x98] sm:$0xff] %v703
      %736 = vst [vmem:[#allocation2 + $0xa0] sm:$0xff] %v704
      %737 = vst [vmem:[#allocation2 + $0xa8] sm:$0xff] %v705
      %738 = vst [vmem:[#allocation2 + $0xb0] sm:$0xff] %v706
      %739 = vst [vmem:[#allocation2 + $0xb8] sm:$0xff] %v707
      %740 = vst [vmem:[#allocation2 + $0xc0] sm:$0xff] %v708
      %741 = vst [vmem:[#allocation2 + $0xc8] sm:$0xff] %v709
      %742 = vst [vmem:[#allocation2 + $0xd0] sm:$0xff] %v710
      %743 = vst [vmem:[#allocation2 + $0xd8] sm:$0xff] %v711
      %744 = vst [vmem:[#allocation2 + $0xe0] sm:$0xff] %v712
      %745 = vst [vmem:[#allocation2 + $0xe8] sm:$0xff] %v713
      %746 = vst [vmem:[#allocation2 + $0xf0] sm:$0xff] %v714
      %747 = vst [vmem:[#allocation2 + $0xf8] sm:$0xff] %v715
      // Predicated region
      $region37: #{double_conv.3} parent=31 // pred_check
        %p748 = pneg %p263
      $region38: #{double_conv.3} parent=31 // pred_check_branch
        %750 = sbr.rel (%p748) target = $region40
      $region39: #{double_conv.3} parent=31 // pred_region
        %v751 = vld [vmem:[%s252] sm:$0x1]
        %v752 = vld [vmem:[%s252 + $0x1] sm:$0x1]
        %v753 = vld [vmem:[#allocation2] sm:$0xff]
        %v754 = vld [vmem:[#allocation2 + $0x8] sm:$0xff]
        %v755 = vld [vmem:[#allocation2 + $0x10] sm:$0xff]
        %v756 = vld [vmem:[#allocation2 + $0x18] sm:$0xff]
        %v757 = vld [vmem:[#allocation2 + $0x20] sm:$0xff]
        %v758 = vld [vmem:[#allocation2 + $0x28] sm:$0xff]
        %v759 = vld [vmem:[#allocation2 + $0x30] sm:$0xff]
        %v760 = vld [vmem:[#allocation2 + $0x38] sm:$0xff]
        %v761 = vld [vmem:[#allocation2 + $0x40] sm:$0xff]
        %v762 = vld [vmem:[#allocation2 + $0x48] sm:$0xff]
        %v763 = vld [vmem:[#allocation2 + $0x50] sm:$0xff]
        %v764 = vld [vmem:[#allocation2 + $0x58] sm:$0xff]
        %v765 = vld [vmem:[#allocation2 + $0x60] sm:$0xff]
        %v766 = vld [vmem:[#allocation2 + $0x68] sm:$0xff]
        %v767 = vld [vmem:[#allocation2 + $0x70] sm:$0xff]
        %v768 = vld [vmem:[#allocation2 + $0x78] sm:$0xff]
        %v769 = vld [vmem:[#allocation2 + $0x80] sm:$0xff]
        %v770 = vld [vmem:[#allocation2 + $0x88] sm:$0xff]
        %v771 = vld [vmem:[#allocation2 + $0x90] sm:$0xff]
        %v772 = vld [vmem:[#allocation2 + $0x98] sm:$0xff]
        %v773 = vld [vmem:[#allocation2 + $0xa0] sm:$0xff]
        %v774 = vld [vmem:[#allocation2 + $0xa8] sm:$0xff]
        %v775 = vld [vmem:[#allocation2 + $0xb0] sm:$0xff]
        %v776 = vld [vmem:[#allocation2 + $0xb8] sm:$0xff]
        %v777 = vld [vmem:[#allocation2 + $0xc0] sm:$0xff]
        %v778 = vld [vmem:[#allocation2 + $0xc8] sm:$0xff]
        %v779 = vld [vmem:[#allocation2 + $0xd0] sm:$0xff]
        %v780 = vld [vmem:[#allocation2 + $0xd8] sm:$0xff]
        %v781 = vld [vmem:[#allocation2 + $0xe0] sm:$0xff]
        %v782 = vld [vmem:[#allocation2 + $0xe8] sm:$0xff]
        %v783 = vld [vmem:[#allocation2 + $0xf0] sm:$0xff]
        %v784 = vld [vmem:[#allocation2 + $0xf8] sm:$0xff]
        %v785 = vlaneseq
        %v786 = vshrl.u32 %v785, 7
        %v787 = vsub.s32 0, %v786
        %v788 = vrot.slane %v751, %v787
        %v789 = vmul.f32 %v753, %v788
        %v790 = vmul.f32 %v754, %v788
        %v791 = vmul.f32 %v755, %v788
        %v792 = vmul.f32 %v756, %v788
        %v793 = vmul.f32 %v757, %v788
        %v794 = vmul.f32 %v758, %v788
        %v795 = vmul.f32 %v759, %v788
        %v796 = vmul.f32 %v760, %v788
        %v797 = vmul.f32 %v761, %v788
        %v798 = vmul.f32 %v762, %v788
        %v799 = vmul.f32 %v763, %v788
        %v800 = vmul.f32 %v764, %v788
        %v801 = vmul.f32 %v765, %v788
        %v802 = vmul.f32 %v766, %v788
        %v803 = vmul.f32 %v767, %v788
        %v804 = vmul.f32 %v768, %v788
        %v805 = vmul.f32 %v769, %v788
        %v806 = vmul.f32 %v770, %v788
        %v807 = vmul.f32 %v771, %v788
        %v808 = vmul.f32 %v772, %v788
        %v809 = vmul.f32 %v773, %v788
        %v810 = vmul.f32 %v774, %v788
        %v811 = vmul.f32 %v775, %v788
        %v812 = vmul.f32 %v776, %v788
        %v813 = vmul.f32 %v777, %v788
        %v814 = vmul.f32 %v778, %v788
        %v815 = vmul.f32 %v779, %v788
        %v816 = vmul.f32 %v780, %v788
        %v817 = vmul.f32 %v781, %v788
        %v818 = vmul.f32 %v782, %v788
        %v819 = vmul.f32 %v783, %v788
        %v820 = vmul.f32 %v784, %v788
        %v821 = vlaneseq
        %v822 = vshrl.u32 %v821, 7
        %v823 = vsub.s32 0, %v822
        %v824 = vrot.slane %v752, %v823
        %v825 = vadd.f32 %v789, %v824
        %v826 = vadd.f32 %v790, %v824
        %v827 = vadd.f32 %v791, %v824
        %v828 = vadd.f32 %v792, %v824
        %v829 = vadd.f32 %v793, %v824
        %v830 = vadd.f32 %v794, %v824
        %v831 = vadd.f32 %v795, %v824
        %v832 = vadd.f32 %v796, %v824
        %v833 = vadd.f32 %v797, %v824
        %v834 = vadd.f32 %v798, %v824
        %v835 = vadd.f32 %v799, %v824
        %v836 = vadd.f32 %v800, %v824
        %v837 = vadd.f32 %v801, %v824
        %v838 = vadd.f32 %v802, %v824
        %v839 = vadd.f32 %v803, %v824
        %v840 = vadd.f32 %v804, %v824
        %v841 = vadd.f32 %v805, %v824
        %v842 = vadd.f32 %v806, %v824
        %v843 = vadd.f32 %v807, %v824
        %v844 = vadd.f32 %v808, %v824
        %v845 = vadd.f32 %v809, %v824
        %v846 = vadd.f32 %v810, %v824
        %v847 = vadd.f32 %v811, %v824
        %v848 = vadd.f32 %v812, %v824
        %v849 = vadd.f32 %v813, %v824
        %v850 = vadd.f32 %v814, %v824
        %v851 = vadd.f32 %v815, %v824
        %v852 = vadd.f32 %v816, %v824
        %v853 = vadd.f32 %v817, %v824
        %v854 = vadd.f32 %v818, %v824
        %v855 = vadd.f32 %v819, %v824
        %v856 = vadd.f32 %v820, %v824
        %v857 = vmax.f32 %v825, 0.0
        %v858 = vmax.f32 %v826, 0.0
        %v859 = vmax.f32 %v827, 0.0
        %v860 = vmax.f32 %v828, 0.0
        %v861 = vmax.f32 %v829, 0.0
        %v862 = vmax.f32 %v830, 0.0
        %v863 = vmax.f32 %v831, 0.0
        %v864 = vmax.f32 %v832, 0.0
        %v865 = vmax.f32 %v833, 0.0
        %v866 = vmax.f32 %v834, 0.0
        %v867 = vmax.f32 %v835, 0.0
        %v868 = vmax.f32 %v836, 0.0
        %v869 = vmax.f32 %v837, 0.0
        %v870 = vmax.f32 %v838, 0.0
        %v871 = vmax.f32 %v839, 0.0
        %v872 = vmax.f32 %v840, 0.0
        %v873 = vmax.f32 %v841, 0.0
        %v874 = vmax.f32 %v842, 0.0
        %v875 = vmax.f32 %v843, 0.0
        %v876 = vmax.f32 %v844, 0.0
        %v877 = vmax.f32 %v845, 0.0
        %v878 = vmax.f32 %v846, 0.0
        %v879 = vmax.f32 %v847, 0.0
        %v880 = vmax.f32 %v848, 0.0
        %v881 = vmax.f32 %v849, 0.0
        %v882 = vmax.f32 %v850, 0.0
        %v883 = vmax.f32 %v851, 0.0
        %v884 = vmax.f32 %v852, 0.0
        %v885 = vmax.f32 %v853, 0.0
        %v886 = vmax.f32 %v854, 0.0
        %v887 = vmax.f32 %v855, 0.0
        %v888 = vmax.f32 %v856, 0.0
        %889 = vst [vmem:[%s260] sm:$0xff] %v857
        %890 = vst [vmem:[%s260 + $0x8] sm:$0xff] %v858
        %891 = vst [vmem:[%s260 + $0x10] sm:$0xff] %v859
        %892 = vst [vmem:[%s260 + $0x18] sm:$0xff] %v860
        %893 = vst [vmem:[%s260 + $0x20] sm:$0xff] %v861
        %894 = vst [vmem:[%s260 + $0x28] sm:$0xff] %v862
        %895 = vst [vmem:[%s260 + $0x30] sm:$0xff] %v863
        %896 = vst [vmem:[%s260 + $0x38] sm:$0xff] %v864
        %897 = vst [vmem:[%s260 + $0x40] sm:$0xff] %v865
        %898 = vst [vmem:[%s260 + $0x48] sm:$0xff] %v866
        %899 = vst [vmem:[%s260 + $0x50] sm:$0xff] %v867
        %900 = vst [vmem:[%s260 + $0x58] sm:$0xff] %v868
        %901 = vst [vmem:[%s260 + $0x60] sm:$0xff] %v869
        %902 = vst [vmem:[%s260 + $0x68] sm:$0xff] %v870
        %903 = vst [vmem:[%s260 + $0x70] sm:$0xff] %v871
        %904 = vst [vmem:[%s260 + $0x78] sm:$0xff] %v872
        %905 = vst [vmem:[%s260 + $0x80] sm:$0xff] %v873
        %906 = vst [vmem:[%s260 + $0x88] sm:$0xff] %v874
        %907 = vst [vmem:[%s260 + $0x90] sm:$0xff] %v875
        %908 = vst [vmem:[%s260 + $0x98] sm:$0xff] %v876
        %909 = vst [vmem:[%s260 + $0xa0] sm:$0xff] %v877
        %910 = vst [vmem:[%s260 + $0xa8] sm:$0xff] %v878
        %911 = vst [vmem:[%s260 + $0xb0] sm:$0xff] %v879
        %912 = vst [vmem:[%s260 + $0xb8] sm:$0xff] %v880
        %913 = vst [vmem:[%s260 + $0xc0] sm:$0xff] %v881
        %914 = vst [vmem:[%s260 + $0xc8] sm:$0xff] %v882
        %915 = vst [vmem:[%s260 + $0xd0] sm:$0xff] %v883
        %916 = vst [vmem:[%s260 + $0xd8] sm:$0xff] %v884
        %917 = vst [vmem:[%s260 + $0xe0] sm:$0xff] %v885
        %918 = vst [vmem:[%s260 + $0xe8] sm:$0xff] %v886
        %919 = vst [vmem:[%s260 + $0xf0] sm:$0xff] %v887
        %920 = vst [vmem:[%s260 + $0xf8] sm:$0xff] %v888
      $region40: #{double_conv.3} parent=31 // pred_fallthru
        _
      %s921 = smul.u32 32, %s19
      %p922 = scmp.lt.s32.totalorder %s921, 63
      %s923 = scalar_select %p922, %s921, 63
      %p924 = scmp.lt.s32.totalorder %s20, 0
      %s925 = scalar_select %p924, %s20, 0
      %s926 = sadd.s32 %s925, %s923
      %s927 = smul.addr %s926, 8
      %s928 = scalar_lea.vmem %s3, %s927
      // Predicated region
      $region41: #{double_conv.3} parent=31 // pred_check
        %p929 = pneg %p135
      $region42: #{double_conv.3} parent=31 // pred_check_branch
        %931 = sbr.rel (%p929) target = $region44
      $region43: #{double_conv.3} parent=31 // pred_region
        %s932 = smul.u32 32, %s19
      $region44: #{double_conv.3} parent=31 // pred_fallthru
        _
    $region32: #{double_conv.3} parent=5 // pred_fallthru
      _
    %p933 = scmp.le.s32.totalorder 2, %s9
    // Predicated region
    $region45: #{double_conv.3} parent=5 // pred_check
      %p934 = pneg %p933
    $region46: #{double_conv.3} parent=5 // pred_check_branch
      %936 = sbr.rel (%p934) target = $region48
    $region47: #{double_conv.3} parent=5 // pred_region
      %s937 = ssub.s32 %s9, 2
      // Predicated region
      $region49: #{double_conv.3} parent=47 // pred_check
        %p938 = pneg %p141
      $region50: #{double_conv.3} parent=47 // pred_check_branch
        %940 = sbr.rel (%p938) target = $region52
      $region51: #{double_conv.3} parent=47 // pred_region
        %s941 = smul.u32 32, %s22
        %p942 = scmp.lt.s32.totalorder %s941, 63
        %s943 = scalar_select %p942, %s941, 63
        %p944 = scmp.lt.s32.totalorder %s23, 0
        %s945 = scalar_select %p944, %s23, 0
        %s946 = sadd.s32 %s945, %s943
        %s947 = smul.addr %s946, 8
        %s948 = scalar_lea.vmem %s3, %s947
      $region52: #{double_conv.3} parent=47 // pred_fallthru
        _
    $region48: #{double_conv.3} parent=5 // pred_fallthru
      _
  $region6: #{double_conv.3} parent=0 // loop_footer
    %s13 = sadd.s32 1, %s9
  $region7: #{double_conv.3} parent=0 // loop_footer_branch
    %8 = sbr.rel target = $region3
  $region8: #{double_conv.3} parent=0 // loop_exit
    _

</llo_original>
